<compile_context>
chip_gen: v5e
topology: v5e:2x2
jax: 0.10.0
libtpu: 0.0.40
codegen_flags: <defaults>
</compile_context>

<pallas_src>
import functools
import math

import jax
import jax.numpy as jnp
from jax import lax
from jax.experimental import pallas as pl
from jax.experimental.pallas import tpu as pltpu


def _mha_kernel(d_k, d_v, n_heads, eps,
                q_ref, k_ref, v_ref,
                wq_ref, bq_ref, wk_ref, bk_ref, wv_ref, bv_ref,
                wp_ref, bp_ref, gamma_ref, beta_ref,
                no_ref, ro_ref, attn_ref):
    q = q_ref[0]                       # (Lq, d_model)
    k = k_ref[0]                       # (Lk, d_model)
    v = v_ref[0]                       # (Lk, d_model)
    l_q, d_model = q.shape

    # Q/K/V projections: one MXU GEMM each, all heads at once.
    q_s = jnp.dot(q, wq_ref[...], preferred_element_type=jnp.float32) + bq_ref[...]
    k_s = jnp.dot(k, wk_ref[...], preferred_element_type=jnp.float32) + bk_ref[...]
    v_s = jnp.dot(v, wv_ref[...], preferred_element_type=jnp.float32) + bv_ref[...]

    w_proj = wp_ref[...]               # (n_heads * d_v, d_model)
    inv_scale = 1.0 / math.sqrt(d_k)

    # proj(concat_h(ctx_h)) == sum_h ctx_h @ W_proj[h*d_v:(h+1)*d_v, :]
    proj_acc = jnp.zeros((l_q, d_model), jnp.float32)
    for h in range(n_heads):           # static unroll over heads
        q_h = q_s[:, h * d_k:(h + 1) * d_k]          # (Lq, d_k)
        k_h = k_s[:, h * d_k:(h + 1) * d_k]          # (Lk, d_k)
        v_h = v_s[:, h * d_v:(h + 1) * d_v]          # (Lk, d_v)

        # scores = q_h @ k_h^T / sqrt(d_k) (contract last dims, no transpose op)
        scores = lax.dot_general(q_h, k_h, (((1,), (1,)), ((), ())),
                                 preferred_element_type=jnp.float32)
        scores = scores * inv_scale

        # softmax over last dim (numerically stable, matches torch.nn.Softmax)
        m = jnp.max(scores, axis=-1, keepdims=True)
        e = jnp.exp(scores - m)
        denom = jnp.sum(e, axis=-1, keepdims=True)
        attn_h = e * pl.reciprocal(denom, approx=True)

        ctx_h = jnp.dot(attn_h, v_h, preferred_element_type=jnp.float32)

        # torch.where(isnan, 0, x): context cleaned before proj, attn cleaned
        # before being returned (context itself was computed with raw attn).
        ctx_h = jnp.where(jnp.isnan(ctx_h), jnp.zeros_like(ctx_h), ctx_h)
        attn_ref[0, h] = jnp.where(jnp.isnan(attn_h), jnp.zeros_like(attn_h),
                                   attn_h)

        wp_h = w_proj[h * d_v:(h + 1) * d_v, :]      # (d_v, d_model)
        proj_acc = proj_acc + jnp.dot(ctx_h, wp_h,
                                      preferred_element_type=jnp.float32)

    output = proj_acc + bp_ref[...]
    ro = q + output                                  # residual add
    ro_ref[0] = ro

    # LayerNorm(d_model): biased variance, eps inside the sqrt (PyTorch).
    mean = jnp.mean(ro, axis=-1, keepdims=True)
    cent = ro - mean
    var = jnp.mean(cent * cent, axis=-1, keepdims=True)
    no = cent * lax.rsqrt(var + eps) * gamma_ref[...] + beta_ref[...]
    no_ref[0] = no


def _linear_init(key, fan_in, fan_out):
    """PyTorch nn.Linear default init; weight stored transposed (in, out)."""
    kw, kb = jax.random.split(key)
    bound = 1.0 / math.sqrt(fan_in)
    w = jax.random.uniform(kw, (fan_in, fan_out), jnp.float32, -bound, bound)
    b = jax.random.uniform(kb, (1, fan_out), jnp.float32, -bound, bound)
    return w, b


def init_mha(key, d_model, d_k, d_v, n_heads):
    kq, kk, kv, kp = jax.random.split(key, 4)
    w_q, b_q = _linear_init(kq, d_model, n_heads * d_k)
    w_k, b_k = _linear_init(kk, d_model, n_heads * d_k)
    w_v, b_v = _linear_init(kv, d_model, n_heads * d_v)
    w_p, b_p = _linear_init(kp, n_heads * d_v, d_model)
    return {
        "w_q": w_q, "b_q": b_q,
        "w_k": w_k, "b_k": b_k,
        "w_v": w_v, "b_v": b_v,
        "w_proj": w_p, "b_proj": b_p,
        "ln_gamma": jnp.ones((1, d_model), jnp.float32),
        "ln_beta": jnp.zeros((1, d_model), jnp.float32),
    }


@functools.partial(jax.jit, static_argnames=("n_heads", "d_k", "d_v"))
def mha_forward(params, q, k, v, *, n_heads, d_k, d_v):
    b, l_q, d_model = q.shape
    l_k = k.shape[1]
    eps = 1e-5

    kernel = functools.partial(_mha_kernel, d_k, d_v, n_heads, eps)

    row3 = lambda i: (i, 0, 0)
    full2 = lambda i: (0, 0)

    in_specs = [
        pl.BlockSpec((1, l_q, d_model), row3),                 # q
        pl.BlockSpec((1, l_k, d_model), row3),                 # k
        pl.BlockSpec((1, l_k, d_model), row3),                 # v
        pl.BlockSpec(params["w_q"].shape, full2),
        pl.BlockSpec(params["b_q"].shape, full2),
        pl.BlockSpec(params["w_k"].shape, full2),
        pl.BlockSpec(params["b_k"].shape, full2),
        pl.BlockSpec(params["w_v"].shape, full2),
        pl.BlockSpec(params["b_v"].shape, full2),
        pl.BlockSpec(params["w_proj"].shape, full2),
        pl.BlockSpec(params["b_proj"].shape, full2),
        pl.BlockSpec(params["ln_gamma"].shape, full2),
        pl.BlockSpec(params["ln_beta"].shape, full2),
    ]
    out_shape = (
        jax.ShapeDtypeStruct((b, l_q, d_model), jnp.float32),          # no (layernorm)
        jax.ShapeDtypeStruct((b, l_q, d_model), jnp.float32),          # ro (residual)
        jax.ShapeDtypeStruct((b, n_heads, l_q, l_k), jnp.float32),     # attn
    )
    out_specs = (
        pl.BlockSpec((1, l_q, d_model), row3),
        pl.BlockSpec((1, l_q, d_model), row3),
        pl.BlockSpec((1, n_heads, l_q, l_k), lambda i: (i, 0, 0, 0)),
    )

    flops = (2 * b * l_q * d_model * n_heads * d_k            # q proj
             + 2 * b * l_k * d_model * n_heads * d_k          # k proj
             + 2 * b * l_k * d_model * n_heads * d_v          # v proj
             + 2 * b * n_heads * l_q * l_k * d_k              # scores
             + 2 * b * n_heads * l_q * l_k * d_v              # context
             + 2 * b * l_q * n_heads * d_v * d_model)         # out proj
    weight_bytes = sum(int(p.size) * 4 for p in params.values())
    bytes_accessed = (4 * (q.size + k.size + v.size)
                      + weight_bytes
                      + 4 * (2 * b * l_q * d_model + b * n_heads * l_q * l_k))

    no, ro, attn = pl.pallas_call(
        kernel,
        out_shape=out_shape,
        grid=(b,),
        in_specs=in_specs,
        out_specs=out_specs,
        compiler_params=pltpu.CompilerParams(
            dimension_semantics=("parallel",),
            vmem_limit_bytes=32 * 1024 * 1024,
        ),
        cost_estimate=pl.CostEstimate(
            flops=flops,
            transcendentals=b * n_heads * l_q * l_k + b * l_q,
            bytes_accessed=bytes_accessed,
        ),
    )(q, k, v,
      params["w_q"], params["b_q"],
      params["w_k"], params["b_k"],
      params["w_v"], params["b_v"],
      params["w_proj"], params["b_proj"],
      params["ln_gamma"], params["ln_beta"])

    # PyTorch: if isnan(no).any() and not isnan(ro).any(): return (ro, attn)
    use_ro = jnp.logical_and(jnp.any(jnp.isnan(no)),
                             jnp.logical_not(jnp.any(jnp.isnan(ro))))
    out = jnp.where(use_ro, ro, no)
    return out, attn


def mha_reference(params, q, k, v, n_heads, d_k, d_v, eps=1e-5):
    """Pure-JAX reference mirroring the PyTorch forward (attn_mask=None)."""
    b, l, d_model = q.shape
    q_s = (q @ params["w_q"] + params["b_q"]).reshape(b, l, n_heads, d_k)
    k_s = (k @ params["w_k"] + params["b_k"]).reshape(b, -1, n_heads, d_k)
    v_s = (v @ params["w_v"] + params["b_v"]).reshape(b, -1, n_heads, d_v)
    q_s = q_s.transpose(0, 2, 1, 3)
    k_s = k_s.transpose(0, 2, 1, 3)
    v_s = v_s.transpose(0, 2, 1, 3)
    scores = jnp.einsum("bhqd,bhkd->bhqk", q_s, k_s) / math.sqrt(d_k)
    attn = jax.nn.softmax(scores, axis=-1)
    context = jnp.einsum("bhqk,bhkd->bhqd", attn, v_s)
    context = jnp.where(jnp.isnan(context), 0.0, context)
    attn = jnp.where(jnp.isnan(attn), 0.0, attn)
    context = context.transpose(0, 2, 1, 3).reshape(b, l, n_heads * d_v)
    output = context @ params["w_proj"] + params["b_proj"]
    ro = q + output
    mean = ro.mean(-1, keepdims=True)
    var = ((ro - mean) ** 2).mean(-1, keepdims=True)
    no = (ro - mean) / jnp.sqrt(var + eps) * params["ln_gamma"] + params["ln_beta"]
    use_ro = jnp.logical_and(jnp.any(jnp.isnan(no)),
                             jnp.logical_not(jnp.any(jnp.isnan(ro))))
    return jnp.where(use_ro, ro, no), attn


if __name__ == "__main__":
    key = jax.random.PRNGKey(0)
    k_params, k_q, k_k, k_v = jax.random.split(key, 4)

    d_model, d_k, d_v, n_heads = 32, 16, 16, 4
    B, L = 2, 8

    params = init_mha(k_params, d_model, d_k, d_v, n_heads)
    q = jax.random.normal(k_q, (B, L, d_model), jnp.float32)
    k = jax.random.normal(k_k, (B, L, d_model), jnp.float32)
    v = jax.random.normal(k_v, (B, L, d_model), jnp.float32)

    out, attn = mha_forward(params, q, k, v, n_heads=n_heads, d_k=d_k, d_v=d_v)
    jax.block_until_ready((out, attn))

    assert out.shape == (B, L, d_model)
    assert attn.shape == (B, n_heads, L, L)

    ref_out, ref_attn = mha_reference(params, q, k, v, n_heads, d_k, d_v)
    assert float(jnp.max(jnp.abs(out - ref_out))) < 5e-2
    assert float(jnp.max(jnp.abs(attn - ref_attn))) < 5e-2

    print("KERNEL_OK")
</pallas_src>

<mosaic_0001>
module attributes {stable_mosaic.version = 11 : i64} {
  func.func @_mha_kernel(%arg0: i32, %arg1: memref<1x8x32xf32, #tpu.memory_space<vmem>>, %arg2: memref<1x8x32xf32, #tpu.memory_space<vmem>>, %arg3: memref<1x8x32xf32, #tpu.memory_space<vmem>>, %arg4: memref<32x64xf32, #tpu.memory_space<vmem>>, %arg5: memref<1x64xf32, #tpu.memory_space<vmem>>, %arg6: memref<32x64xf32, #tpu.memory_space<vmem>>, %arg7: memref<1x64xf32, #tpu.memory_space<vmem>>, %arg8: memref<32x64xf32, #tpu.memory_space<vmem>>, %arg9: memref<1x64xf32, #tpu.memory_space<vmem>>, %arg10: memref<64x32xf32, #tpu.memory_space<vmem>>, %arg11: memref<1x32xf32, #tpu.memory_space<vmem>>, %arg12: memref<1x32xf32, #tpu.memory_space<vmem>>, %arg13: memref<1x32xf32, #tpu.memory_space<vmem>>, %arg14: memref<1x8x32xf32, #tpu.memory_space<vmem>>, %arg15: memref<1x8x32xf32, #tpu.memory_space<vmem>>, %arg16: memref<1x4x8x8xf32, #tpu.memory_space<vmem>>) attributes {dimension_semantics = [#tpu.dimension_semantics<parallel>], iteration_bounds = array<i64: 2>, scalar_prefetch = 0 : i64, scratch_operands = 0 : i64, tpu.core_type = #tpu.core_type<tc>, window_params = [{transform_indices = @transform_0, window_bounds = array<i64: 1, 8, 32>}, {transform_indices = @transform_1, window_bounds = array<i64: 1, 8, 32>}, {transform_indices = @transform_2, window_bounds = array<i64: 1, 8, 32>}, {pipeline_mode = #tpu.pipeline_mode<synchronous>, transform_indices = @transform_3, window_bounds = array<i64: 32, 64>}, {pipeline_mode = #tpu.pipeline_mode<synchronous>, transform_indices = @transform_4, window_bounds = array<i64: 1, 64>}, {pipeline_mode = #tpu.pipeline_mode<synchronous>, transform_indices = @transform_5, window_bounds = array<i64: 32, 64>}, {pipeline_mode = #tpu.pipeline_mode<synchronous>, transform_indices = @transform_6, window_bounds = array<i64: 1, 64>}, {pipeline_mode = #tpu.pipeline_mode<synchronous>, transform_indices = @transform_7, window_bounds = array<i64: 32, 64>}, {pipeline_mode = #tpu.pipeline_mode<synchronous>, transform_indices = @transform_8, window_bounds = array<i64: 1, 64>}, {pipeline_mode = #tpu.pipeline_mode<synchronous>, transform_indices = @transform_9, window_bounds = array<i64: 64, 32>}, {pipeline_mode = #tpu.pipeline_mode<synchronous>, transform_indices = @transform_10, window_bounds = array<i64: 1, 32>}, {pipeline_mode = #tpu.pipeline_mode<synchronous>, transform_indices = @transform_11, window_bounds = array<i64: 1, 32>}, {pipeline_mode = #tpu.pipeline_mode<synchronous>, transform_indices = @transform_12, window_bounds = array<i64: 1, 32>}, {transform_indices = @transform_13, window_bounds = array<i64: 1, 8, 32>}, {transform_indices = @transform_14, window_bounds = array<i64: 1, 8, 32>}, {transform_indices = @transform_15, window_bounds = array<i64: 1, 4, 8, 8>}]} {
    %c0 = arith.constant 0 : index
    %c0_0 = arith.constant 0 : index
    %c0_1 = arith.constant 0 : index
    %0 = vector.load %arg1[%c0, %c0_0, %c0_1] : memref<1x8x32xf32, #tpu.memory_space<vmem>>, vector<1x8x32xf32>
    %1 = vector.shape_cast %0 : vector<1x8x32xf32> to vector<8x32xf32>
    %c0_2 = arith.constant 0 : index
    %c0_3 = arith.constant 0 : index
    %c0_4 = arith.constant 0 : index
    %2 = vector.load %arg2[%c0_2, %c0_3, %c0_4] : memref<1x8x32xf32, #tpu.memory_space<vmem>>, vector<1x8x32xf32>
    %3 = vector.shape_cast %2 : vector<1x8x32xf32> to vector<8x32xf32>
    %c0_5 = arith.constant 0 : index
    %c0_6 = arith.constant 0 : index
    %c0_7 = arith.constant 0 : index
    %4 = vector.load %arg3[%c0_5, %c0_6, %c0_7] : memref<1x8x32xf32, #tpu.memory_space<vmem>>, vector<1x8x32xf32>
    %5 = vector.shape_cast %4 : vector<1x8x32xf32> to vector<8x32xf32>
    %c0_8 = arith.constant 0 : index
    %c0_9 = arith.constant 0 : index
    %6 = vector.load %arg4[%c0_8, %c0_9] : memref<32x64xf32, #tpu.memory_space<vmem>>, vector<32x64xf32>
    %cst = arith.constant dense<0.000000e+00> : vector<8x64xf32>
    %7 = tpu.matmul %1, %6, %cst {dimension_numbers = #tpu.dot_dimension_numbers<[1], [0], [0], [1], [0, 0, 1, 1], [], []>} : vector<8x32xf32>, vector<32x64xf32>, vector<8x64xf32> -> vector<8x64xf32>
    %c0_10 = arith.constant 0 : index
    %c0_11 = arith.constant 0 : index
    %8 = vector.load %arg5[%c0_10, %c0_11] : memref<1x64xf32, #tpu.memory_space<vmem>>, vector<1x64xf32>
    %9 = vector.broadcast %8 : vector<1x64xf32> to vector<8x64xf32>
    %10 = arith.addf %7, %9 : vector<8x64xf32>
    %c0_12 = arith.constant 0 : index
    %c0_13 = arith.constant 0 : index
    %11 = vector.load %arg6[%c0_12, %c0_13] : memref<32x64xf32, #tpu.memory_space<vmem>>, vector<32x64xf32>
    %cst_14 = arith.constant dense<0.000000e+00> : vector<8x64xf32>
    %12 = tpu.matmul %3, %11, %cst_14 {dimension_numbers = #tpu.dot_dimension_numbers<[1], [0], [0], [1], [0, 0, 1, 1], [], []>} : vector<8x32xf32>, vector<32x64xf32>, vector<8x64xf32> -> vector<8x64xf32>
    %c0_15 = arith.constant 0 : index
    %c0_16 = arith.constant 0 : index
    %13 = vector.load %arg7[%c0_15, %c0_16] : memref<1x64xf32, #tpu.memory_space<vmem>>, vector<1x64xf32>
    %14 = vector.broadcast %13 : vector<1x64xf32> to vector<8x64xf32>
    %15 = arith.addf %12, %14 : vector<8x64xf32>
    %c0_17 = arith.constant 0 : index
    %c0_18 = arith.constant 0 : index
    %16 = vector.load %arg8[%c0_17, %c0_18] : memref<32x64xf32, #tpu.memory_space<vmem>>, vector<32x64xf32>
    %cst_19 = arith.constant dense<0.000000e+00> : vector<8x64xf32>
    %17 = tpu.matmul %5, %16, %cst_19 {dimension_numbers = #tpu.dot_dimension_numbers<[1], [0], [0], [1], [0, 0, 1, 1], [], []>} : vector<8x32xf32>, vector<32x64xf32>, vector<8x64xf32> -> vector<8x64xf32>
    %c0_20 = arith.constant 0 : index
    %c0_21 = arith.constant 0 : index
    %18 = vector.load %arg9[%c0_20, %c0_21] : memref<1x64xf32, #tpu.memory_space<vmem>>, vector<1x64xf32>
    %19 = vector.broadcast %18 : vector<1x64xf32> to vector<8x64xf32>
    %20 = arith.addf %17, %19 : vector<8x64xf32>
    %c0_22 = arith.constant 0 : index
    %c0_23 = arith.constant 0 : index
    %21 = vector.load %arg10[%c0_22, %c0_23] : memref<64x32xf32, #tpu.memory_space<vmem>>, vector<64x32xf32>
    %cst_24 = arith.constant 0.000000e+00 : f32
    %22 = vector.broadcast %cst_24 : f32 to vector<8x32xf32>
    %23 = vector.extract_strided_slice %10 {offsets = [0, 0], sizes = [8, 16], strides = [1, 1]} : vector<8x64xf32> to vector<8x16xf32>
    %24 = vector.extract_strided_slice %15 {offsets = [0, 0], sizes = [8, 16], strides = [1, 1]} : vector<8x64xf32> to vector<8x16xf32>
    %25 = vector.extract_strided_slice %20 {offsets = [0, 0], sizes = [8, 16], strides = [1, 1]} : vector<8x64xf32> to vector<8x16xf32>
    %cst_25 = arith.constant dense<0.000000e+00> : vector<8x8xf32>
    %26 = tpu.matmul %23, %24, %cst_25 {dimension_numbers = #tpu.dot_dimension_numbers<[1], [1], [0], [0], [0, 0, 1, 0], [], []>} : vector<8x16xf32>, vector<8x16xf32>, vector<8x8xf32> -> vector<8x8xf32>
    %cst_26 = arith.constant 2.500000e-01 : f32
    %27 = vector.broadcast %cst_26 : f32 to vector<8x8xf32>
    %28 = arith.mulf %26, %27 : vector<8x8xf32>
    %cst_27 = arith.constant dense<0xFF800000> : vector<8xf32>
    %29 = vector.multi_reduction <maximumf>, %28, %cst_27 [1] : vector<8x8xf32> to vector<8xf32>
    %30 = vector.shape_cast %29 : vector<8xf32> to vector<8x1xf32>
    %31 = vector.broadcast %30 : vector<8x1xf32> to vector<8x8xf32>
    %32 = arith.subf %28, %31 : vector<8x8xf32>
    %33 = math.exp %32 : vector<8x8xf32>
    %cst_28 = arith.constant dense<0.000000e+00> : vector<8xf32>
    %34 = vector.multi_reduction <add>, %33, %cst_28 [1] : vector<8x8xf32> to vector<8xf32>
    %35 = vector.shape_cast %34 : vector<8xf32> to vector<8x1xf32>
    %36 = tpu.reciprocal %35 {approx = true} : vector<8x1xf32> -> vector<8x1xf32>
    %37 = vector.broadcast %36 : vector<8x1xf32> to vector<8x8xf32>
    %38 = arith.mulf %33, %37 : vector<8x8xf32>
    %cst_29 = arith.constant dense<0.000000e+00> : vector<8x16xf32>
    %39 = tpu.matmul %38, %25, %cst_29 {dimension_numbers = #tpu.dot_dimension_numbers<[1], [0], [0], [1], [0, 0, 1, 1], [], []>} : vector<8x8xf32>, vector<8x16xf32>, vector<8x16xf32> -> vector<8x16xf32>
    %40 = arith.cmpf one, %39, %39 : vector<8x16xf32>
    %cst_30 = arith.constant 0.000000e+00 : f32
    %41 = vector.broadcast %cst_30 : f32 to vector<8x16xf32>
    %42 = arith.select %40, %41, %39 : vector<8x16xi1>, vector<8x16xf32>
    %43 = arith.cmpf one, %38, %38 : vector<8x8xf32>
    %cst_31 = arith.constant 0.000000e+00 : f32
    %44 = vector.broadcast %cst_31 : f32 to vector<8x8xf32>
    %45 = arith.select %43, %44, %38 : vector<8x8xi1>, vector<8x8xf32>
    %c0_32 = arith.constant 0 : index
    %c0_33 = arith.constant 0 : index
    %c0_34 = arith.constant 0 : index
    %c0_35 = arith.constant 0 : index
    %46 = vector.load %arg16[%c0_32, %c0_33, %c0_34, %c0_35] : memref<1x4x8x8xf32, #tpu.memory_space<vmem>>, vector<1x1x8x8xf32>
    %47 = vector.shape_cast %46 : vector<1x1x8x8xf32> to vector<8x8xf32>
    %48 = vector.shape_cast %45 : vector<8x8xf32> to vector<1x1x8x8xf32>
    tpu.vector_store %arg16[%c0_32, %c0_33, %c0_34, %c0_35], %48 {strides = array<i32>} : memref<1x4x8x8xf32, #tpu.memory_space<vmem>>, vector<1x1x8x8xf32>,
    %49 = vector.extract_strided_slice %21 {offsets = [0, 0], sizes = [16, 32], strides = [1, 1]} : vector<64x32xf32> to vector<16x32xf32>
    %cst_36 = arith.constant dense<0.000000e+00> : vector<8x32xf32>
    %50 = tpu.matmul %42, %49, %cst_36 {dimension_numbers = #tpu.dot_dimension_numbers<[1], [0], [0], [1], [0, 0, 1, 1], [], []>} : vector<8x16xf32>, vector<16x32xf32>, vector<8x32xf32> -> vector<8x32xf32>
    %51 = arith.addf %22, %50 : vector<8x32xf32>
    %52 = vector.extract_strided_slice %10 {offsets = [0, 16], sizes = [8, 16], strides = [1, 1]} : vector<8x64xf32> to vector<8x16xf32>
    %53 = vector.extract_strided_slice %15 {offsets = [0, 16], sizes = [8, 16], strides = [1, 1]} : vector<8x64xf32> to vector<8x16xf32>
    %54 = vector.extract_strided_slice %20 {offsets = [0, 16], sizes = [8, 16], strides = [1, 1]} : vector<8x64xf32> to vector<8x16xf32>
    %cst_37 = arith.constant dense<0.000000e+00> : vector<8x8xf32>
    %55 = tpu.matmul %52, %53, %cst_37 {dimension_numbers = #tpu.dot_dimension_numbers<[1], [1], [0], [0], [0, 0, 1, 0], [], []>} : vector<8x16xf32>, vector<8x16xf32>, vector<8x8xf32> -> vector<8x8xf32>
    %cst_38 = arith.constant 2.500000e-01 : f32
    %56 = vector.broadcast %cst_38 : f32 to vector<8x8xf32>
    %57 = arith.mulf %55, %56 : vector<8x8xf32>
    %cst_39 = arith.constant dense<0xFF800000> : vector<8xf32>
    %58 = vector.multi_reduction <maximumf>, %57, %cst_39 [1] : vector<8x8xf32> to vector<8xf32>
    %59 = vector.shape_cast %58 : vector<8xf32> to vector<8x1xf32>
    %60 = vector.broadcast %59 : vector<8x1xf32> to vector<8x8xf32>
    %61 = arith.subf %57, %60 : vector<8x8xf32>
    %62 = math.exp %61 : vector<8x8xf32>
    %cst_40 = arith.constant dense<0.000000e+00> : vector<8xf32>
    %63 = vector.multi_reduction <add>, %62, %cst_40 [1] : vector<8x8xf32> to vector<8xf32>
    %64 = vector.shape_cast %63 : vector<8xf32> to vector<8x1xf32>
    %65 = tpu.reciprocal %64 {approx = true} : vector<8x1xf32> -> vector<8x1xf32>
    %66 = vector.broadcast %65 : vector<8x1xf32> to vector<8x8xf32>
    %67 = arith.mulf %62, %66 : vector<8x8xf32>
    %cst_41 = arith.constant dense<0.000000e+00> : vector<8x16xf32>
    %68 = tpu.matmul %67, %54, %cst_41 {dimension_numbers = #tpu.dot_dimension_numbers<[1], [0], [0], [1], [0, 0, 1, 1], [], []>} : vector<8x8xf32>, vector<8x16xf32>, vector<8x16xf32> -> vector<8x16xf32>
    %69 = arith.cmpf one, %68, %68 : vector<8x16xf32>
    %cst_42 = arith.constant 0.000000e+00 : f32
    %70 = vector.broadcast %cst_42 : f32 to vector<8x16xf32>
    %71 = arith.select %69, %70, %68 : vector<8x16xi1>, vector<8x16xf32>
    %72 = arith.cmpf one, %67, %67 : vector<8x8xf32>
    %cst_43 = arith.constant 0.000000e+00 : f32
    %73 = vector.broadcast %cst_43 : f32 to vector<8x8xf32>
    %74 = arith.select %72, %73, %67 : vector<8x8xi1>, vector<8x8xf32>
    %c0_44 = arith.constant 0 : index
    %c1 = arith.constant 1 : index
    %c0_45 = arith.constant 0 : index
    %c0_46 = arith.constant 0 : index
    %75 = vector.load %arg16[%c0_44, %c1, %c0_45, %c0_46] : memref<1x4x8x8xf32, #tpu.memory_space<vmem>>, vector<1x1x8x8xf32>
    %76 = vector.shape_cast %75 : vector<1x1x8x8xf32> to vector<8x8xf32>
    %77 = vector.shape_cast %74 : vector<8x8xf32> to vector<1x1x8x8xf32>
    tpu.vector_store %arg16[%c0_44, %c1, %c0_45, %c0_46], %77 {strides = array<i32>} : memref<1x4x8x8xf32, #tpu.memory_space<vmem>>, vector<1x1x8x8xf32>,
    %78 = vector.extract_strided_slice %21 {offsets = [16, 0], sizes = [16, 32], strides = [1, 1]} : vector<64x32xf32> to vector<16x32xf32>
    %cst_47 = arith.constant dense<0.000000e+00> : vector<8x32xf32>
    %79 = tpu.matmul %71, %78, %cst_47 {dimension_numbers = #tpu.dot_dimension_numbers<[1], [0], [0], [1], [0, 0, 1, 1], [], []>} : vector<8x16xf32>, vector<16x32xf32>, vector<8x32xf32> -> vector<8x32xf32>
    %80 = arith.addf %51, %79 : vector<8x32xf32>
    %81 = vector.extract_strided_slice %10 {offsets = [0, 32], sizes = [8, 16], strides = [1, 1]} : vector<8x64xf32> to vector<8x16xf32>
    %82 = vector.extract_strided_slice %15 {offsets = [0, 32], sizes = [8, 16], strides = [1, 1]} : vector<8x64xf32> to vector<8x16xf32>
    %83 = vector.extract_strided_slice %20 {offsets = [0, 32], sizes = [8, 16], strides = [1, 1]} : vector<8x64xf32> to vector<8x16xf32>
    %cst_48 = arith.constant dense<0.000000e+00> : vector<8x8xf32>
    %84 = tpu.matmul %81, %82, %cst_48 {dimension_numbers = #tpu.dot_dimension_numbers<[1], [1], [0], [0], [0, 0, 1, 0], [], []>} : vector<8x16xf32>, vector<8x16xf32>, vector<8x8xf32> -> vector<8x8xf32>
    %cst_49 = arith.constant 2.500000e-01 : f32
    %85 = vector.broadcast %cst_49 : f32 to vector<8x8xf32>
    %86 = arith.mulf %84, %85 : vector<8x8xf32>
    %cst_50 = arith.constant dense<0xFF800000> : vector<8xf32>
    %87 = vector.multi_reduction <maximumf>, %86, %cst_50 [1] : vector<8x8xf32> to vector<8xf32>
    %88 = vector.shape_cast %87 : vector<8xf32> to vector<8x1xf32>
    %89 = vector.broadcast %88 : vector<8x1xf32> to vector<8x8xf32>
    %90 = arith.subf %86, %89 : vector<8x8xf32>
    %91 = math.exp %90 : vector<8x8xf32>
    %cst_51 = arith.constant dense<0.000000e+00> : vector<8xf32>
    %92 = vector.multi_reduction <add>, %91, %cst_51 [1] : vector<8x8xf32> to vector<8xf32>
    %93 = vector.shape_cast %92 : vector<8xf32> to vector<8x1xf32>
    %94 = tpu.reciprocal %93 {approx = true} : vector<8x1xf32> -> vector<8x1xf32>
    %95 = vector.broadcast %94 : vector<8x1xf32> to vector<8x8xf32>
    %96 = arith.mulf %91, %95 : vector<8x8xf32>
    %cst_52 = arith.constant dense<0.000000e+00> : vector<8x16xf32>
    %97 = tpu.matmul %96, %83, %cst_52 {dimension_numbers = #tpu.dot_dimension_numbers<[1], [0], [0], [1], [0, 0, 1, 1], [], []>} : vector<8x8xf32>, vector<8x16xf32>, vector<8x16xf32> -> vector<8x16xf32>
    %98 = arith.cmpf one, %97, %97 : vector<8x16xf32>
    %cst_53 = arith.constant 0.000000e+00 : f32
    %99 = vector.broadcast %cst_53 : f32 to vector<8x16xf32>
    %100 = arith.select %98, %99, %97 : vector<8x16xi1>, vector<8x16xf32>
    %101 = arith.cmpf one, %96, %96 : vector<8x8xf32>
    %cst_54 = arith.constant 0.000000e+00 : f32
    %102 = vector.broadcast %cst_54 : f32 to vector<8x8xf32>
    %103 = arith.select %101, %102, %96 : vector<8x8xi1>, vector<8x8xf32>
    %c0_55 = arith.constant 0 : index
    %c2 = arith.constant 2 : index
    %c0_56 = arith.constant 0 : index
    %c0_57 = arith.constant 0 : index
    %104 = vector.load %arg16[%c0_55, %c2, %c0_56, %c0_57] : memref<1x4x8x8xf32, #tpu.memory_space<vmem>>, vector<1x1x8x8xf32>
    %105 = vector.shape_cast %104 : vector<1x1x8x8xf32> to vector<8x8xf32>
    %106 = vector.shape_cast %103 : vector<8x8xf32> to vector<1x1x8x8xf32>
    tpu.vector_store %arg16[%c0_55, %c2, %c0_56, %c0_57], %106 {strides = array<i32>} : memref<1x4x8x8xf32, #tpu.memory_space<vmem>>, vector<1x1x8x8xf32>,
    %107 = vector.extract_strided_slice %21 {offsets = [32, 0], sizes = [16, 32], strides = [1, 1]} : vector<64x32xf32> to vector<16x32xf32>
    %cst_58 = arith.constant dense<0.000000e+00> : vector<8x32xf32>
    %108 = tpu.matmul %100, %107, %cst_58 {dimension_numbers = #tpu.dot_dimension_numbers<[1], [0], [0], [1], [0, 0, 1, 1], [], []>} : vector<8x16xf32>, vector<16x32xf32>, vector<8x32xf32> -> vector<8x32xf32>
    %109 = arith.addf %80, %108 : vector<8x32xf32>
    %110 = vector.extract_strided_slice %10 {offsets = [0, 48], sizes = [8, 16], strides = [1, 1]} : vector<8x64xf32> to vector<8x16xf32>
    %111 = vector.extract_strided_slice %15 {offsets = [0, 48], sizes = [8, 16], strides = [1, 1]} : vector<8x64xf32> to vector<8x16xf32>
    %112 = vector.extract_strided_slice %20 {offsets = [0, 48], sizes = [8, 16], strides = [1, 1]} : vector<8x64xf32> to vector<8x16xf32>
    %cst_59 = arith.constant dense<0.000000e+00> : vector<8x8xf32>
    %113 = tpu.matmul %110, %111, %cst_59 {dimension_numbers = #tpu.dot_dimension_numbers<[1], [1], [0], [0], [0, 0, 1, 0], [], []>} : vector<8x16xf32>, vector<8x16xf32>, vector<8x8xf32> -> vector<8x8xf32>
    %cst_60 = arith.constant 2.500000e-01 : f32
    %114 = vector.broadcast %cst_60 : f32 to vector<8x8xf32>
    %115 = arith.mulf %113, %114 : vector<8x8xf32>
    %cst_61 = arith.constant dense<0xFF800000> : vector<8xf32>
    %116 = vector.multi_reduction <maximumf>, %115, %cst_61 [1] : vector<8x8xf32> to vector<8xf32>
    %117 = vector.shape_cast %116 : vector<8xf32> to vector<8x1xf32>
    %118 = vector.broadcast %117 : vector<8x1xf32> to vector<8x8xf32>
    %119 = arith.subf %115, %118 : vector<8x8xf32>
    %120 = math.exp %119 : vector<8x8xf32>
    %cst_62 = arith.constant dense<0.000000e+00> : vector<8xf32>
    %121 = vector.multi_reduction <add>, %120, %cst_62 [1] : vector<8x8xf32> to vector<8xf32>
    %122 = vector.shape_cast %121 : vector<8xf32> to vector<8x1xf32>
    %123 = tpu.reciprocal %122 {approx = true} : vector<8x1xf32> -> vector<8x1xf32>
    %124 = vector.broadcast %123 : vector<8x1xf32> to vector<8x8xf32>
    %125 = arith.mulf %120, %124 : vector<8x8xf32>
    %cst_63 = arith.constant dense<0.000000e+00> : vector<8x16xf32>
    %126 = tpu.matmul %125, %112, %cst_63 {dimension_numbers = #tpu.dot_dimension_numbers<[1], [0], [0], [1], [0, 0, 1, 1], [], []>} : vector<8x8xf32>, vector<8x16xf32>, vector<8x16xf32> -> vector<8x16xf32>
    %127 = arith.cmpf one, %126, %126 : vector<8x16xf32>
    %cst_64 = arith.constant 0.000000e+00 : f32
    %128 = vector.broadcast %cst_64 : f32 to vector<8x16xf32>
    %129 = arith.select %127, %128, %126 : vector<8x16xi1>, vector<8x16xf32>
    %130 = arith.cmpf one, %125, %125 : vector<8x8xf32>
    %cst_65 = arith.constant 0.000000e+00 : f32
    %131 = vector.broadcast %cst_65 : f32 to vector<8x8xf32>
    %132 = arith.select %130, %131, %125 : vector<8x8xi1>, vector<8x8xf32>
    %c0_66 = arith.constant 0 : index
    %c3 = arith.constant 3 : index
    %c0_67 = arith.constant 0 : index
    %c0_68 = arith.constant 0 : index
    %133 = vector.load %arg16[%c0_66, %c3, %c0_67, %c0_68] : memref<1x4x8x8xf32, #tpu.memory_space<vmem>>, vector<1x1x8x8xf32>
    %134 = vector.shape_cast %133 : vector<1x1x8x8xf32> to vector<8x8xf32>
    %135 = vector.shape_cast %132 : vector<8x8xf32> to vector<1x1x8x8xf32>
    tpu.vector_store %arg16[%c0_66, %c3, %c0_67, %c0_68], %135 {strides = array<i32>} : memref<1x4x8x8xf32, #tpu.memory_space<vmem>>, vector<1x1x8x8xf32>,
    %136 = vector.extract_strided_slice %21 {offsets = [48, 0], sizes = [16, 32], strides = [1, 1]} : vector<64x32xf32> to vector<16x32xf32>
    %cst_69 = arith.constant dense<0.000000e+00> : vector<8x32xf32>
    %137 = tpu.matmul %129, %136, %cst_69 {dimension_numbers = #tpu.dot_dimension_numbers<[1], [0], [0], [1], [0, 0, 1, 1], [], []>} : vector<8x16xf32>, vector<16x32xf32>, vector<8x32xf32> -> vector<8x32xf32>
    %138 = arith.addf %109, %137 : vector<8x32xf32>
    %c0_70 = arith.constant 0 : index
    %c0_71 = arith.constant 0 : index
    %139 = vector.load %arg11[%c0_70, %c0_71] : memref<1x32xf32, #tpu.memory_space<vmem>>, vector<1x32xf32>
    %140 = vector.broadcast %139 : vector<1x32xf32> to vector<8x32xf32>
    %141 = arith.addf %138, %140 : vector<8x32xf32>
    %142 = arith.addf %1, %141 : vector<8x32xf32>
    %c0_72 = arith.constant 0 : index
    %c0_73 = arith.constant 0 : index
    %c0_74 = arith.constant 0 : index
    %143 = vector.load %arg15[%c0_72, %c0_73, %c0_74] : memref<1x8x32xf32, #tpu.memory_space<vmem>>, vector<1x8x32xf32>
    %144 = vector.shape_cast %143 : vector<1x8x32xf32> to vector<8x32xf32>
    %145 = vector.shape_cast %142 : vector<8x32xf32> to vector<1x8x32xf32>
    tpu.vector_store %arg15[%c0_72, %c0_73, %c0_74], %145 {strides = array<i32>} : memref<1x8x32xf32, #tpu.memory_space<vmem>>, vector<1x8x32xf32>,
    %cst_75 = arith.constant dense<0.000000e+00> : vector<8xf32>
    %146 = vector.multi_reduction <add>, %142, %cst_75 [1] : vector<8x32xf32> to vector<8xf32>
    %147 = vector.shape_cast %146 : vector<8xf32> to vector<8x1xf32>
    %cst_76 = arith.constant 3.200000e+01 : f32
    %148 = vector.broadcast %cst_76 : f32 to vector<8x1xf32>
    %149 = arith.divf %147, %148 : vector<8x1xf32>
    %150 = vector.broadcast %149 : vector<8x1xf32> to vector<8x32xf32>
    %151 = arith.subf %142, %150 : vector<8x32xf32>
    %152 = arith.mulf %151, %151 : vector<8x32xf32>
    %cst_77 = arith.constant dense<0.000000e+00> : vector<8xf32>
    %153 = vector.multi_reduction <add>, %152, %cst_77 [1] : vector<8x32xf32> to vector<8xf32>
    %154 = vector.shape_cast %153 : vector<8xf32> to vector<8x1xf32>
    %cst_78 = arith.constant 3.200000e+01 : f32
    %155 = vector.broadcast %cst_78 : f32 to vector<8x1xf32>
    %156 = arith.divf %154, %155 : vector<8x1xf32>
    %cst_79 = arith.constant 9.99999974E-6 : f32
    %157 = vector.broadcast %cst_79 : f32 to vector<8x1xf32>
    %158 = arith.addf %156, %157 : vector<8x1xf32>
    %159 = math.rsqrt %158 : vector<8x1xf32>
    %160 = vector.broadcast %159 : vector<8x1xf32> to vector<8x32xf32>
    %161 = arith.mulf %151, %160 : vector<8x32xf32>
    %c0_80 = arith.constant 0 : index
    %c0_81 = arith.constant 0 : index
    %162 = vector.load %arg12[%c0_80, %c0_81] : memref<1x32xf32, #tpu.memory_space<vmem>>, vector<1x32xf32>
    %163 = vector.broadcast %162 : vector<1x32xf32> to vector<8x32xf32>
    %164 = arith.mulf %161, %163 : vector<8x32xf32>
    %c0_82 = arith.constant 0 : index
    %c0_83 = arith.constant 0 : index
    %165 = vector.load %arg13[%c0_82, %c0_83] : memref<1x32xf32, #tpu.memory_space<vmem>>, vector<1x32xf32>
    %166 = vector.broadcast %165 : vector<1x32xf32> to vector<8x32xf32>
    %167 = arith.addf %164, %166 : vector<8x32xf32>
    %c0_84 = arith.constant 0 : index
    %c0_85 = arith.constant 0 : index
    %c0_86 = arith.constant 0 : index
    %168 = vector.load %arg14[%c0_84, %c0_85, %c0_86] : memref<1x8x32xf32, #tpu.memory_space<vmem>>, vector<1x8x32xf32>
    %169 = vector.shape_cast %168 : vector<1x8x32xf32> to vector<8x32xf32>
    %170 = vector.shape_cast %167 : vector<8x32xf32> to vector<1x8x32xf32>
    tpu.vector_store %arg14[%c0_84, %c0_85, %c0_86], %170 {strides = array<i32>} : memref<1x8x32xf32, #tpu.memory_space<vmem>>, vector<1x8x32xf32>,
    return
  }
  func.func @transform_0(%arg0: i32) -> (i32, i32, i32) {
    %c0_i32 = arith.constant 0 : i32
    %c0_i32_0 = arith.constant 0 : i32
    %c0_i32_1 = arith.constant 0 : i32
    return %arg0, %c0_i32, %c0_i32_0 : i32, i32, i32
  }
  func.func @transform_1(%arg0: i32) -> (i32, i32, i32) {
    %c0_i32 = arith.constant 0 : i32
    %c0_i32_0 = arith.constant 0 : i32
    %c0_i32_1 = arith.constant 0 : i32
    return %arg0, %c0_i32, %c0_i32_0 : i32, i32, i32
  }
  func.func @transform_2(%arg0: i32) -> (i32, i32, i32) {
    %c0_i32 = arith.constant 0 : i32
    %c0_i32_0 = arith.constant 0 : i32
    %c0_i32_1 = arith.constant 0 : i32
    return %arg0, %c0_i32, %c0_i32_0 : i32, i32, i32
  }
  func.func @transform_3(%arg0: i32) -> (i32, i32) {
    %c0_i32 = arith.constant 0 : i32
    %c0_i32_0 = arith.constant 0 : i32
    %c0_i32_1 = arith.constant 0 : i32
    return %c0_i32, %c0_i32_0 : i32, i32
  }
  func.func @transform_4(%arg0: i32) -> (i32, i32) {
    %c0_i32 = arith.constant 0 : i32
    %c0_i32_0 = arith.constant 0 : i32
    %c0_i32_1 = arith.constant 0 : i32
    return %c0_i32, %c0_i32_0 : i32, i32
  }
  func.func @transform_5(%arg0: i32) -> (i32, i32) {
    %c0_i32 = arith.constant 0 : i32
    %c0_i32_0 = arith.constant 0 : i32
    %c0_i32_1 = arith.constant 0 : i32
    return %c0_i32, %c0_i32_0 : i32, i32
  }
  func.func @transform_6(%arg0: i32) -> (i32, i32) {
    %c0_i32 = arith.constant 0 : i32
    %c0_i32_0 = arith.constant 0 : i32
    %c0_i32_1 = arith.constant 0 : i32
    return %c0_i32, %c0_i32_0 : i32, i32
  }
  func.func @transform_7(%arg0: i32) -> (i32, i32) {
    %c0_i32 = arith.constant 0 : i32
    %c0_i32_0 = arith.constant 0 : i32
    %c0_i32_1 = arith.constant 0 : i32
    return %c0_i32, %c0_i32_0 : i32, i32
  }
  func.func @transform_8(%arg0: i32) -> (i32, i32) {
    %c0_i32 = arith.constant 0 : i32
    %c0_i32_0 = arith.constant 0 : i32
    %c0_i32_1 = arith.constant 0 : i32
    return %c0_i32, %c0_i32_0 : i32, i32
  }
  func.func @transform_9(%arg0: i32) -> (i32, i32) {
    %c0_i32 = arith.constant 0 : i32
    %c0_i32_0 = arith.constant 0 : i32
    %c0_i32_1 = arith.constant 0 : i32
    return %c0_i32, %c0_i32_0 : i32, i32
  }
  func.func @transform_10(%arg0: i32) -> (i32, i32) {
    %c0_i32 = arith.constant 0 : i32
    %c0_i32_0 = arith.constant 0 : i32
    %c0_i32_1 = arith.constant 0 : i32
    return %c0_i32, %c0_i32_0 : i32, i32
  }
  func.func @transform_11(%arg0: i32) -> (i32, i32) {
    %c0_i32 = arith.constant 0 : i32
    %c0_i32_0 = arith.constant 0 : i32
    %c0_i32_1 = arith.constant 0 : i32
    return %c0_i32, %c0_i32_0 : i32, i32
  }
  func.func @transform_12(%arg0: i32) -> (i32, i32) {
    %c0_i32 = arith.constant 0 : i32
    %c0_i32_0 = arith.constant 0 : i32
    %c0_i32_1 = arith.constant 0 : i32
    return %c0_i32, %c0_i32_0 : i32, i32
  }
  func.func @transform_13(%arg0: i32) -> (i32, i32, i32) {
    %c0_i32 = arith.constant 0 : i32
    %c0_i32_0 = arith.constant 0 : i32
    %c0_i32_1 = arith.constant 0 : i32
    return %arg0, %c0_i32, %c0_i32_0 : i32, i32, i32
  }
  func.func @transform_14(%arg0: i32) -> (i32, i32, i32) {
    %c0_i32 = arith.constant 0 : i32
    %c0_i32_0 = arith.constant 0 : i32
    %c0_i32_1 = arith.constant 0 : i32
    return %arg0, %c0_i32, %c0_i32_0 : i32, i32, i32
  }
  func.func @transform_15(%arg0: i32) -> (i32, i32, i32, i32) {
    %c0_i32 = arith.constant 0 : i32
    %c0_i32_0 = arith.constant 0 : i32
    %c0_i32_1 = arith.constant 0 : i32
    %c0_i32_2 = arith.constant 0 : i32
    return %arg0, %c0_i32, %c0_i32_0, %c0_i32_1 : i32, i32, i32, i32
  }
}

</mosaic_0001>

<llo_original>
// kernel: mha_forward.1
$region0: #{mha_forward.1}
  #allocation0 [shape = 'u32[]', space=smem, size = 0x4, offset = 0x4, fixed_abs, tag = 'smem constant byte address 0x4 - core index']
  #allocation1 [shape = 'u32[72,128]{1,0:T(1,128)}', space=vmem, size = 0x9000, scoped, tag = 'internal scratch']
  %s0 = inlined_call_operand.hbm [shape: f32[2,8,32], index: 0, kind: input, shape index: {}]
  %s1 = inlined_call_operand.hbm [shape: f32[2,8,32], index: 1, kind: input, shape index: {}]
  %s2 = inlined_call_operand.hbm [shape: f32[2,8,32], index: 2, kind: input, shape index: {}]
  %s3 = inlined_call_operand.vmem [shape: f32[32,64], index: 3, kind: input, shape index: {}]
  %s4 = inlined_call_operand.vmem [shape: f32[1,64], index: 4, kind: input, shape index: {}]
  %s5 = inlined_call_operand.vmem [shape: f32[32,64], index: 5, kind: input, shape index: {}]
  %s6 = inlined_call_operand.hbm [shape: f32[1,64], index: 6, kind: input, shape index: {}]
  %s7 = inlined_call_operand.vmem [shape: f32[32,64], index: 7, kind: input, shape index: {}]
  %s8 = inlined_call_operand.hbm [shape: f32[1,64], index: 8, kind: input, shape index: {}]
  %s9 = inlined_call_operand.vmem [shape: f32[64,32], index: 9, kind: input, shape index: {}]
  %s10 = inlined_call_operand.hbm [shape: f32[1,32], index: 10, kind: input, shape index: {}]
  %s11 = inlined_call_operand.vmem [shape: f32[1,32], index: 11, kind: input, shape index: {}]
  %s12 = inlined_call_operand.vmem [shape: f32[1,32], index: 12, kind: input, shape index: {}]
  %s13 = inlined_call_operand.vmem [shape: f32[2,8,32], index: 13, kind: output, shape index: {0}]
  %s14 = inlined_call_operand.vmem [shape: f32[2,8,32], index: 14, kind: output, shape index: {1}]
  %s15 = inlined_call_operand.hbm [shape: f32[2,4,8,8], index: 15, kind: output, shape index: {2}]
  %16 = xla_tuple %s13, %s14, %s15
  %s17 = sld [smem:[#allocation0]]
  $region125: #{mha_forward.1} parent=0
    _
  %s19 = ssub.s32 1, %s17
  %s20 = scalar_select 0, %s19, %s17
  $region1: #{mha_forward.1} parent=0
    #allocation2 [shape = 'u8[8192]{0}', space=vmem, size = 0x2000, scoped, tag = 'input window, operand 0']
    #allocation3 [shape = 's32[2]{0}', space=sflag, size = 0x8, scoped, tag = 'scoped memory for mha_forward.1']
    #allocation4 [shape = 's32[2]{0}', space=sflag, size = 0x8, scoped, tag = 'scoped memory for mha_forward.1']
    #allocation5 [shape = 'u8[8192]{0}', space=vmem, size = 0x2000, scoped, tag = 'input window, operand 1']
    #allocation6 [shape = 's32[2]{0}', space=sflag, size = 0x8, scoped, tag = 'scoped memory for mha_forward.1']
    #allocation7 [shape = 'u8[8192]{0}', space=vmem, size = 0x2000, scoped, tag = 'input window, operand 2']
    #allocation8 [shape = 'u8[512]{0}', space=vmem, size = 0x400, scoped, tag = 'input window, operand 6, single buffered']
    #allocation9 [shape = 's32[1]{0}', space=sflag, size = 0x4, scoped, tag = 'scoped memory for mha_forward.1']
    #allocation10 [shape = 'u8[512]{0}', space=vmem, size = 0x400, scoped, tag = 'input window, operand 8, single buffered']
    #allocation11 [shape = 'u8[512]{0}', space=vmem, size = 0x400, scoped, tag = 'input window, operand 10, single buffered']
    #allocation12 [shape = 's32[1]{0}', space=sflag, size = 0x4, scoped, tag = 'scoped memory for mha_forward.1']
    #allocation13 [shape = 'u8[32768]{0}', space=vmem, size = 0x8000, scoped, tag = 'output window, operand 2']
    %21 = vsyncpa [#allocation3], 0
    %s22 = scalar_lea.sflag [#allocation3], 1
    %23 = vsyncpa %s22, 0
    %24 = vsyncpa [#allocation6], 0
    %s25 = scalar_lea.sflag [#allocation6], 1
    %26 = vsyncpa %s25, 0
    %27 = vsyncpa [#allocation9], 0
    %28 = vsyncpa [#allocation12], 0
    %29 = vsyncpa [#allocation4], 0
    %s30 = scalar_lea.sflag [#allocation4], 1
    %31 = vsyncpa %s30, 0
    loop: start=0, step=1, limit=4
    $region2: #{mha_forward.1} parent=1 // loop_pre_header
      _
    $region3: #{mha_forward.1} parent=1 // loop_header
      %s33 = sphi 0, %s37
      %p34 = scmp.ge.s32.totalorder %s33, 4
      %s43 = sphi 0, %s45
      %s46 = sphi 0, %s43
      %s47 = sphi 0, %s46
      %s63 = sphi 0, %s47
      %s69 = sphi 0, %s71
      %s72 = sphi 0, %s69
      %s73 = sphi 0, %s72
      %s89 = sphi 0, %s73
      %s95 = sphi 0, %s97
      %s98 = sphi 0, %s95
      %s99 = sphi 0, %s98
      %s115 = sphi 0, %s99
      %s119 = sphi 0, %s119
      %s121 = sphi 0, %s119
      %s122 = sphi 0, %s121
      %s136 = sphi 0, %s122
      %s140 = sphi 0, %s140
      %s142 = sphi 0, %s140
      %s143 = sphi 0, %s142
      %s157 = sphi 0, %s143
      %s161 = sphi 0, %s161
      %s163 = sphi 0, %s161
      %s164 = sphi 0, %s163
      %s178 = sphi 0, %s164
      %s182 = sphi 0, %s182
      %s184 = sphi 0, %s182
      %s185 = sphi 0, %s184
      %s199 = sphi 0, %s185
      %s203 = sphi 0, %s203
      %s205 = sphi 0, %s203
      %s206 = sphi 0, %s205
      %s220 = sphi 0, %s206
      %s224 = sphi 0, %s224
      %s226 = sphi 0, %s224
      %s227 = sphi 0, %s226
      %s241 = sphi 0, %s227
      %s245 = sphi 0, %s245
      %s247 = sphi 0, %s245
      %s248 = sphi 0, %s247
      %s262 = sphi 0, %s248
      %s266 = sphi 0, %s266
      %s268 = sphi 0, %s266
      %s269 = sphi 0, %s268
      %s283 = sphi 0, %s269
      %s287 = sphi 0, %s287
      %s289 = sphi 0, %s287
      %s290 = sphi 0, %s289
      %s304 = sphi 0, %s290
      %s308 = sphi 0, %s308
      %s310 = sphi 0, %s308
      %s311 = sphi 0, %s310
      %s325 = sphi 0, %s311
      %s331 = sphi 0, %s333
      %s334 = sphi 0, %s331
      %s335 = sphi 0, %s334
      %s351 = sphi 0, %s335
      %s357 = sphi 0, %s359
      %s360 = sphi 0, %s357
      %s361 = sphi 0, %s360
      %s377 = sphi 0, %s361
      %s383 = sphi 0, %s385
      %s386 = sphi 0, %s383
      %s387 = sphi 0, %s386
      %s403 = sphi 0, %s387
    $region4: #{mha_forward.1} parent=1 // loop_header_branch
      %36 = sbr.rel (%p34) target = $region8
    $region5: #{mha_forward.1} parent=1 // loop_body
      %s38 = ssub.s32 %s33, 1
      %s39 = ssub.s32 %s33, 2
      %s40 = sadd.s32 %s33, 1
      %s41 = ssub.s32 %s33, %s40
      %p42 = scmp.eq.s32.totalorder %s41, 0
      %s44 = sadd.s32 %s43, 1
      %s45 = scalar_select %p42, %s43, %s44
      %p48 = pneg %p42
      %p49 = scmp.eq.s32.totalorder %s33, 1
      %p50 = por %p48, %p49
      %p51 = scmp.ne.s32.totalorder %s43, %s46
      %p52 = scmp.eq.s32.totalorder %s33, 0
      %p53 = por %p51, %p52
      %p54 = scmp.ne.s32.totalorder %s43, %s46
      %p55 = scmp.eq.s32.totalorder %s38, 1
      %p56 = por %p54, %p55
      %p57 = scmp.ne.s32.totalorder %s46, %s47
      %p58 = scmp.eq.s32.totalorder %s38, 0
      %p59 = por %p57, %p58
      %p60 = scmp.ne.s32.totalorder %s46, %s47
      %p61 = scmp.eq.s32.totalorder %s39, 1
      %p62 = por %p60, %p61
      %p64 = scmp.ne.s32.totalorder %s47, %s63
      %p65 = scmp.eq.s32.totalorder %s39, 0
      %p66 = por %p64, %p65
      %s67 = ssub.s32 %s33, %s40
      %p68 = scmp.eq.s32.totalorder %s67, 0
      %s70 = sadd.s32 %s69, 1
      %s71 = scalar_select %p68, %s69, %s70
      %p74 = pneg %p68
      %p75 = scmp.eq.s32.totalorder %s33, 1
      %p76 = por %p74, %p75
      %p77 = scmp.ne.s32.totalorder %s69, %s72
      %p78 = scmp.eq.s32.totalorder %s33, 0
      %p79 = por %p77, %p78
      %p80 = scmp.ne.s32.totalorder %s69, %s72
      %p81 = scmp.eq.s32.totalorder %s38, 1
      %p82 = por %p80, %p81
      %p83 = scmp.ne.s32.totalorder %s72, %s73
      %p84 = scmp.eq.s32.totalorder %s38, 0
      %p85 = por %p83, %p84
      %p86 = scmp.ne.s32.totalorder %s72, %s73
      %p87 = scmp.eq.s32.totalorder %s39, 1
      %p88 = por %p86, %p87
      %p90 = scmp.ne.s32.totalorder %s73, %s89
      %p91 = scmp.eq.s32.totalorder %s39, 0
      %p92 = por %p90, %p91
      %s93 = ssub.s32 %s33, %s40
      %p94 = scmp.eq.s32.totalorder %s93, 0
      %s96 = sadd.s32 %s95, 1
      %s97 = scalar_select %p94, %s95, %s96
      %p100 = pneg %p94
      %p101 = scmp.eq.s32.totalorder %s33, 1
      %p102 = por %p100, %p101
      %p103 = scmp.ne.s32.totalorder %s95, %s98
      %p104 = scmp.eq.s32.totalorder %s33, 0
      %p105 = por %p103, %p104
      %p106 = scmp.ne.s32.totalorder %s95, %s98
      %p107 = scmp.eq.s32.totalorder %s38, 1
      %p108 = por %p106, %p107
      %p109 = scmp.ne.s32.totalorder %s98, %s99
      %p110 = scmp.eq.s32.totalorder %s38, 0
      %p111 = por %p109, %p110
      %p112 = scmp.ne.s32.totalorder %s98, %s99
      %p113 = scmp.eq.s32.totalorder %s39, 1
      %p114 = por %p112, %p113
      %p116 = scmp.ne.s32.totalorder %s99, %s115
      %p117 = scmp.eq.s32.totalorder %s39, 0
      %p118 = por %p116, %p117
      %s120 = sadd.s32 %s119, 1
      %p123 = scmp.eq.s32.totalorder %s33, 1
      %p124 = scmp.ne.s32.totalorder %s119, %s121
      %p125 = scmp.eq.s32.totalorder %s33, 0
      %p126 = por %p124, %p125
      %p127 = scmp.ne.s32.totalorder %s119, %s121
      %p128 = scmp.eq.s32.totalorder %s38, 1
      %p129 = por %p127, %p128
      %p130 = scmp.ne.s32.totalorder %s121, %s122
      %p131 = scmp.eq.s32.totalorder %s38, 0
      %p132 = por %p130, %p131
      %p133 = scmp.ne.s32.totalorder %s121, %s122
      %p134 = scmp.eq.s32.totalorder %s39, 1
      %p135 = por %p133, %p134
      %p137 = scmp.ne.s32.totalorder %s122, %s136
      %p138 = scmp.eq.s32.totalorder %s39, 0
      %p139 = por %p137, %p138
      %s141 = sadd.s32 %s140, 1
      %p144 = scmp.eq.s32.totalorder %s33, 1
      %p145 = scmp.ne.s32.totalorder %s140, %s142
      %p146 = scmp.eq.s32.totalorder %s33, 0
      %p147 = por %p145, %p146
      %p148 = scmp.ne.s32.totalorder %s140, %s142
      %p149 = scmp.eq.s32.totalorder %s38, 1
      %p150 = por %p148, %p149
      %p151 = scmp.ne.s32.totalorder %s142, %s143
      %p152 = scmp.eq.s32.totalorder %s38, 0
      %p153 = por %p151, %p152
      %p154 = scmp.ne.s32.totalorder %s142, %s143
      %p155 = scmp.eq.s32.totalorder %s39, 1
      %p156 = por %p154, %p155
      %p158 = scmp.ne.s32.totalorder %s143, %s157
      %p159 = scmp.eq.s32.totalorder %s39, 0
      %p160 = por %p158, %p159
      %s162 = sadd.s32 %s161, 1
      %p165 = scmp.eq.s32.totalorder %s33, 1
      %p166 = scmp.ne.s32.totalorder %s161, %s163
      %p167 = scmp.eq.s32.totalorder %s33, 0
      %p168 = por %p166, %p167
      %p169 = scmp.ne.s32.totalorder %s161, %s163
      %p170 = scmp.eq.s32.totalorder %s38, 1
      %p171 = por %p169, %p170
      %p172 = scmp.ne.s32.totalorder %s163, %s164
      %p173 = scmp.eq.s32.totalorder %s38, 0
      %p174 = por %p172, %p173
      %p175 = scmp.ne.s32.totalorder %s163, %s164
      %p176 = scmp.eq.s32.totalorder %s39, 1
      %p177 = por %p175, %p176
      %p179 = scmp.ne.s32.totalorder %s164, %s178
      %p180 = scmp.eq.s32.totalorder %s39, 0
      %p181 = por %p179, %p180
      %s183 = sadd.s32 %s182, 1
      %p186 = scmp.eq.s32.totalorder %s33, 1
      %p187 = scmp.ne.s32.totalorder %s182, %s184
      %p188 = scmp.eq.s32.totalorder %s33, 0
      %p189 = por %p187, %p188
      %p190 = scmp.ne.s32.totalorder %s182, %s184
      %p191 = scmp.eq.s32.totalorder %s38, 1
      %p192 = por %p190, %p191
      %p193 = scmp.ne.s32.totalorder %s184, %s185
      %p194 = scmp.eq.s32.totalorder %s38, 0
      %p195 = por %p193, %p194
      %p196 = scmp.ne.s32.totalorder %s184, %s185
      %p197 = scmp.eq.s32.totalorder %s39, 1
      %p198 = por %p196, %p197
      %p200 = scmp.ne.s32.totalorder %s185, %s199
      %p201 = scmp.eq.s32.totalorder %s39, 0
      %p202 = por %p200, %p201
      %s204 = sadd.s32 %s203, 1
      %p207 = scmp.eq.s32.totalorder %s33, 1
      %p208 = scmp.ne.s32.totalorder %s203, %s205
      %p209 = scmp.eq.s32.totalorder %s33, 0
      %p210 = por %p208, %p209
      %p211 = scmp.ne.s32.totalorder %s203, %s205
      %p212 = scmp.eq.s32.totalorder %s38, 1
      %p213 = por %p211, %p212
      %p214 = scmp.ne.s32.totalorder %s205, %s206
      %p215 = scmp.eq.s32.totalorder %s38, 0
      %p216 = por %p214, %p215
      %p217 = scmp.ne.s32.totalorder %s205, %s206
      %p218 = scmp.eq.s32.totalorder %s39, 1
      %p219 = por %p217, %p218
      %p221 = scmp.ne.s32.totalorder %s206, %s220
      %p222 = scmp.eq.s32.totalorder %s39, 0
      %p223 = por %p221, %p222
      %s225 = sadd.s32 %s224, 1
      %p228 = scmp.eq.s32.totalorder %s33, 1
      %p229 = scmp.ne.s32.totalorder %s224, %s226
      %p230 = scmp.eq.s32.totalorder %s33, 0
      %p231 = por %p229, %p230
      %p232 = scmp.ne.s32.totalorder %s224, %s226
      %p233 = scmp.eq.s32.totalorder %s38, 1
      %p234 = por %p232, %p233
      %p235 = scmp.ne.s32.totalorder %s226, %s227
      %p236 = scmp.eq.s32.totalorder %s38, 0
      %p237 = por %p235, %p236
      %p238 = scmp.ne.s32.totalorder %s226, %s227
      %p239 = scmp.eq.s32.totalorder %s39, 1
      %p240 = por %p238, %p239
      %p242 = scmp.ne.s32.totalorder %s227, %s241
      %p243 = scmp.eq.s32.totalorder %s39, 0
      %p244 = por %p242, %p243
      %s246 = sadd.s32 %s245, 1
      %p249 = scmp.eq.s32.totalorder %s33, 1
      %p250 = scmp.ne.s32.totalorder %s245, %s247
      %p251 = scmp.eq.s32.totalorder %s33, 0
      %p252 = por %p250, %p251
      %p253 = scmp.ne.s32.totalorder %s245, %s247
      %p254 = scmp.eq.s32.totalorder %s38, 1
      %p255 = por %p253, %p254
      %p256 = scmp.ne.s32.totalorder %s247, %s248
      %p257 = scmp.eq.s32.totalorder %s38, 0
      %p258 = por %p256, %p257
      %p259 = scmp.ne.s32.totalorder %s247, %s248
      %p260 = scmp.eq.s32.totalorder %s39, 1
      %p261 = por %p259, %p260
      %p263 = scmp.ne.s32.totalorder %s248, %s262
      %p264 = scmp.eq.s32.totalorder %s39, 0
      %p265 = por %p263, %p264
      %s267 = sadd.s32 %s266, 1
      %p270 = scmp.eq.s32.totalorder %s33, 1
      %p271 = scmp.ne.s32.totalorder %s266, %s268
      %p272 = scmp.eq.s32.totalorder %s33, 0
      %p273 = por %p271, %p272
      %p274 = scmp.ne.s32.totalorder %s266, %s268
      %p275 = scmp.eq.s32.totalorder %s38, 1
      %p276 = por %p274, %p275
      %p277 = scmp.ne.s32.totalorder %s268, %s269
      %p278 = scmp.eq.s32.totalorder %s38, 0
      %p279 = por %p277, %p278
      %p280 = scmp.ne.s32.totalorder %s268, %s269
      %p281 = scmp.eq.s32.totalorder %s39, 1
      %p282 = por %p280, %p281
      %p284 = scmp.ne.s32.totalorder %s269, %s283
      %p285 = scmp.eq.s32.totalorder %s39, 0
      %p286 = por %p284, %p285
      %s288 = sadd.s32 %s287, 1
      %p291 = scmp.eq.s32.totalorder %s33, 1
      %p292 = scmp.ne.s32.totalorder %s287, %s289
      %p293 = scmp.eq.s32.totalorder %s33, 0
      %p294 = por %p292, %p293
      %p295 = scmp.ne.s32.totalorder %s287, %s289
      %p296 = scmp.eq.s32.totalorder %s38, 1
      %p297 = por %p295, %p296
      %p298 = scmp.ne.s32.totalorder %s289, %s290
      %p299 = scmp.eq.s32.totalorder %s38, 0
      %p300 = por %p298, %p299
      %p301 = scmp.ne.s32.totalorder %s289, %s290
      %p302 = scmp.eq.s32.totalorder %s39, 1
      %p303 = por %p301, %p302
      %p305 = scmp.ne.s32.totalorder %s290, %s304
      %p306 = scmp.eq.s32.totalorder %s39, 0
      %p307 = por %p305, %p306
      %s309 = sadd.s32 %s308, 1
      %p312 = scmp.eq.s32.totalorder %s33, 1
      %p313 = scmp.ne.s32.totalorder %s308, %s310
      %p314 = scmp.eq.s32.totalorder %s33, 0
      %p315 = por %p313, %p314
      %p316 = scmp.ne.s32.totalorder %s308, %s310
      %p317 = scmp.eq.s32.totalorder %s38, 1
      %p318 = por %p316, %p317
      %p319 = scmp.ne.s32.totalorder %s310, %s311
      %p320 = scmp.eq.s32.totalorder %s38, 0
      %p321 = por %p319, %p320
      %p322 = scmp.ne.s32.totalorder %s310, %s311
      %p323 = scmp.eq.s32.totalorder %s39, 1
      %p324 = por %p322, %p323
      %p326 = scmp.ne.s32.totalorder %s311, %s325
      %p327 = scmp.eq.s32.totalorder %s39, 0
      %p328 = por %p326, %p327
      %s329 = ssub.s32 %s33, %s40
      %p330 = scmp.eq.s32.totalorder %s329, 0
      %s332 = sadd.s32 %s331, 1
      %s333 = scalar_select %p330, %s331, %s332
      %p336 = pneg %p330
      %p337 = scmp.eq.s32.totalorder %s33, 1
      %p338 = por %p336, %p337
      %p339 = scmp.ne.s32.totalorder %s331, %s334
      %p340 = scmp.eq.s32.totalorder %s33, 0
      %p341 = por %p339, %p340
      %p342 = scmp.ne.s32.totalorder %s331, %s334
      %p343 = scmp.eq.s32.totalorder %s38, 1
      %p344 = por %p342, %p343
      %p345 = scmp.ne.s32.totalorder %s334, %s335
      %p346 = scmp.eq.s32.totalorder %s38, 0
      %p347 = por %p345, %p346
      %p348 = scmp.ne.s32.totalorder %s334, %s335
      %p349 = scmp.eq.s32.totalorder %s39, 1
      %p350 = por %p348, %p349
      %p352 = scmp.ne.s32.totalorder %s335, %s351
      %p353 = scmp.eq.s32.totalorder %s39, 0
      %p354 = por %p352, %p353
      %s355 = ssub.s32 %s33, %s40
      %p356 = scmp.eq.s32.totalorder %s355, 0
      %s358 = sadd.s32 %s357, 1
      %s359 = scalar_select %p356, %s357, %s358
      %p362 = pneg %p356
      %p363 = scmp.eq.s32.totalorder %s33, 1
      %p364 = por %p362, %p363
      %p365 = scmp.ne.s32.totalorder %s357, %s360
      %p366 = scmp.eq.s32.totalorder %s33, 0
      %p367 = por %p365, %p366
      %p368 = scmp.ne.s32.totalorder %s357, %s360
      %p369 = scmp.eq.s32.totalorder %s38, 1
      %p370 = por %p368, %p369
      %p371 = scmp.ne.s32.totalorder %s360, %s361
      %p372 = scmp.eq.s32.totalorder %s38, 0
      %p373 = por %p371, %p372
      %p374 = scmp.ne.s32.totalorder %s360, %s361
      %p375 = scmp.eq.s32.totalorder %s39, 1
      %p376 = por %p374, %p375
      %p378 = scmp.ne.s32.totalorder %s361, %s377
      %p379 = scmp.eq.s32.totalorder %s39, 0
      %p380 = por %p378, %p379
      %s381 = ssub.s32 %s33, %s40
      %p382 = scmp.eq.s32.totalorder %s381, 0
      %s384 = sadd.s32 %s383, 1
      %s385 = scalar_select %p382, %s383, %s384
      %p388 = pneg %p382
      %p389 = scmp.eq.s32.totalorder %s33, 1
      %p390 = por %p388, %p389
      %p391 = scmp.ne.s32.totalorder %s383, %s386
      %p392 = scmp.eq.s32.totalorder %s33, 0
      %p393 = por %p391, %p392
      %p394 = scmp.ne.s32.totalorder %s383, %s386
      %p395 = scmp.eq.s32.totalorder %s38, 1
      %p396 = por %p394, %p395
      %p397 = scmp.ne.s32.totalorder %s386, %s387
      %p398 = scmp.eq.s32.totalorder %s38, 0
      %p399 = por %p397, %p398
      %p400 = scmp.ne.s32.totalorder %s386, %s387
      %p401 = scmp.eq.s32.totalorder %s39, 1
      %p402 = por %p400, %p401
      %p404 = scmp.ne.s32.totalorder %s387, %s403
      %p405 = scmp.eq.s32.totalorder %s39, 0
      %p406 = por %p404, %p405
      %p407 = scmp.le.s32.totalorder 1, %s33
      %p408 = scmp.lt.s32.totalorder %s33, 3
      %p409 = pnand %p407, %p408
      %p410 = pneg %p409
      // Predicated region
      $region9: #{mha_forward.1} parent=5 // pred_check
        _
      $region10: #{mha_forward.1} parent=5 // pred_check_branch
        %412 = sbr.rel (%p409) target = $region12
      $region11: #{mha_forward.1} parent=5 // pred_region
        %s413 = ssub.s32 %s33, 1
        // Predicated region
        $region13: #{mha_forward.1} parent=11 // pred_check
          %p414 = pneg %p132
        $region14: #{mha_forward.1} parent=11 // pred_check_branch
          %416 = sbr.rel (%p414) target = $region16
        $region15: #{mha_forward.1} parent=11 // pred_region
          _
        $region16: #{mha_forward.1} parent=11 // pred_fallthru
          _
        // Predicated region
        $region17: #{mha_forward.1} parent=11 // pred_check
          %p417 = pneg %p153
        $region18: #{mha_forward.1} parent=11 // pred_check_branch
          %419 = sbr.rel (%p417) target = $region20
        $region19: #{mha_forward.1} parent=11 // pred_region
          _
        $region20: #{mha_forward.1} parent=11 // pred_fallthru
          _
        // Predicated region
        $region21: #{mha_forward.1} parent=11 // pred_check
          %p420 = pneg %p174
        $region22: #{mha_forward.1} parent=11 // pred_check_branch
          %422 = sbr.rel (%p420) target = $region24
        $region23: #{mha_forward.1} parent=11 // pred_region
          _
        $region24: #{mha_forward.1} parent=11 // pred_fallthru
          _
        // Predicated region
        $region25: #{mha_forward.1} parent=11 // pred_check
          %p423 = pneg %p195
        $region26: #{mha_forward.1} parent=11 // pred_check_branch
          %425 = sbr.rel (%p423) target = $region28
        $region27: #{mha_forward.1} parent=11 // pred_region
          %427 = vsyncadd [#allocation9], 0
          %s429 = sshll.u32 %s6, 4
          %s430 = int_to_ptr.hbm [resolvable:$true] %s429
          %s431 = sshll.u32 [#allocation8], 4
          %s432 = int_to_ptr.vmem [resolvable:$true] %s431
          %434 = dma.hbm_to_vmem [thread:$0]  %s430, 16, %s432, [#allocation9]
        $region28: #{mha_forward.1} parent=11 // pred_fallthru
          _
        // Predicated region
        $region29: #{mha_forward.1} parent=11 // pred_check
          %p435 = pneg %p216
        $region30: #{mha_forward.1} parent=11 // pred_check_branch
          %437 = sbr.rel (%p435) target = $region32
        $region31: #{mha_forward.1} parent=11 // pred_region
          _
        $region32: #{mha_forward.1} parent=11 // pred_fallthru
          _
        // Predicated region
        $region33: #{mha_forward.1} parent=11 // pred_check
          %p438 = pneg %p237
        $region34: #{mha_forward.1} parent=11 // pred_check_branch
          %440 = sbr.rel (%p438) target = $region36
        $region35: #{mha_forward.1} parent=11 // pred_region
          %442 = vsyncadd [#allocation9], 0
          %s444 = sshll.u32 %s8, 4
          %s445 = int_to_ptr.hbm [resolvable:$true] %s444
          %s446 = sshll.u32 [#allocation10], 4
          %s447 = int_to_ptr.vmem [resolvable:$true] %s446
          %449 = dma.hbm_to_vmem [thread:$0]  %s445, 16, %s447, [#allocation9]
        $region36: #{mha_forward.1} parent=11 // pred_fallthru
          _
        // Predicated region
        $region37: #{mha_forward.1} parent=11 // pred_check
          %p450 = pneg %p258
        $region38: #{mha_forward.1} parent=11 // pred_check_branch
          %452 = sbr.rel (%p450) target = $region40
        $region39: #{mha_forward.1} parent=11 // pred_region
          _
        $region40: #{mha_forward.1} parent=11 // pred_fallthru
          _
        // Predicated region
        $region41: #{mha_forward.1} parent=11 // pred_check
          %p453 = pneg %p279
        $region42: #{mha_forward.1} parent=11 // pred_check_branch
          %455 = sbr.rel (%p453) target = $region44
        $region43: #{mha_forward.1} parent=11 // pred_region
          %457 = vsyncadd [#allocation12], 0
          %s459 = sshll.u32 %s10, 4
          %s460 = int_to_ptr.hbm [resolvable:$true] %s459
          %s461 = sshll.u32 [#allocation11], 4
          %s462 = int_to_ptr.vmem [resolvable:$true] %s461
          %464 = dma.hbm_to_vmem [thread:$0]  %s460, 16, %s462, [#allocation12]
        $region44: #{mha_forward.1} parent=11 // pred_fallthru
          _
        // Predicated region
        $region45: #{mha_forward.1} parent=11 // pred_check
          %p465 = pneg %p300
        $region46: #{mha_forward.1} parent=11 // pred_check_branch
          %467 = sbr.rel (%p465) target = $region48
        $region47: #{mha_forward.1} parent=11 // pred_region
          _
        $region48: #{mha_forward.1} parent=11 // pred_fallthru
          _
        // Predicated region
        $region49: #{mha_forward.1} parent=11 // pred_check
          %p468 = pneg %p321
        $region50: #{mha_forward.1} parent=11 // pred_check_branch
          %470 = sbr.rel (%p468) target = $region52
        $region51: #{mha_forward.1} parent=11 // pred_region
          _
        $region52: #{mha_forward.1} parent=11 // pred_fallthru
          _
      $region12: #{mha_forward.1} parent=5 // pred_fallthru
        _
      %p471 = scmp.lt.s32.totalorder %s33, 2
      // Predicated region
      $region53: #{mha_forward.1} parent=5 // pred_check
        %p472 = pneg %p471
      $region54: #{mha_forward.1} parent=5 // pred_check_branch
        %474 = sbr.rel (%p472) target = $region56
      $region55: #{mha_forward.1} parent=5 // pred_region
        // Predicated region
        $region57: #{mha_forward.1} parent=55 // pred_check
          %p475 = pneg %p53
        $region58: #{mha_forward.1} parent=55 // pred_check_branch
          %477 = sbr.rel (%p475) target = $region60
        $region59: #{mha_forward.1} parent=55 // pred_region
          %s478 = sand.u32 %s43, 1
          %s479 = scalar_lea.sflag [#allocation3], %s478
          %s480 = sand.u32 %s43, 1
          %s481 = smul.addr %s480, 8
          %s482 = scalar_lea.vmem [#allocation2], %s481
          %484 = vsyncadd %s479, 0
          %s485 = smul.addr %s33, 8
          %s486 = scalar_lea.hbm %s0, %s485
          %s488 = sshll.u32 %s486, 4
          %s489 = int_to_ptr.hbm [resolvable:$true] %s488
          %s490 = sshll.u32 %s482, 4
          %s491 = int_to_ptr.vmem [resolvable:$true] %s490
          %493 = dma.hbm_to_vmem [thread:$0]  %s489, 128, %s491, %s479
        $region60: #{mha_forward.1} parent=55 // pred_fallthru
          _
        // Predicated region
        $region61: #{mha_forward.1} parent=55 // pred_check
          %p494 = pneg %p79
        $region62: #{mha_forward.1} parent=55 // pred_check_branch
          %496 = sbr.rel (%p494) target = $region64
        $region63: #{mha_forward.1} parent=55 // pred_region
          %s497 = sand.u32 %s33, 1
          %s498 = scalar_lea.sflag [#allocation6], %s497
          %s499 = sand.u32 %s69, 1
          %s500 = smul.addr %s499, 8
          %s501 = scalar_lea.vmem [#allocation5], %s500
          %503 = vsyncadd %s498, 0
          %s504 = smul.addr %s33, 8
          %s505 = scalar_lea.hbm %s1, %s504
          %s507 = sshll.u32 %s505, 4
          %s508 = int_to_ptr.hbm [resolvable:$true] %s507
          %s509 = sshll.u32 %s501, 4
          %s510 = int_to_ptr.vmem [resolvable:$true] %s509
          %512 = dma.hbm_to_vmem [thread:$0]  %s508, 128, %s510, %s498
        $region64: #{mha_forward.1} parent=55 // pred_fallthru
          _
        // Predicated region
        $region65: #{mha_forward.1} parent=55 // pred_check
          %p513 = pneg %p105
        $region66: #{mha_forward.1} parent=55 // pred_check_branch
          %515 = sbr.rel (%p513) target = $region68
        $region67: #{mha_forward.1} parent=55 // pred_region
          %s516 = sand.u32 %s33, 1
          %s517 = scalar_lea.sflag [#allocation6], %s516
          %s518 = sand.u32 %s95, 1
          %s519 = smul.addr %s518, 8
          %s520 = scalar_lea.vmem [#allocation7], %s519
          %522 = vsyncadd %s517, 0
          %s523 = smul.addr %s33, 8
          %s524 = scalar_lea.hbm %s2, %s523
          %s526 = sshll.u32 %s524, 4
          %s527 = int_to_ptr.hbm [resolvable:$true] %s526
          %s528 = sshll.u32 %s520, 4
          %s529 = int_to_ptr.vmem [resolvable:$true] %s528
          %531 = dma.hbm_to_vmem [thread:$0]  %s527, 128, %s529, %s517
        $region68: #{mha_forward.1} parent=55 // pred_fallthru
          _
      $region56: #{mha_forward.1} parent=5 // pred_fallthru
        _
      %p532 = scmp.le.s32.totalorder 1, %s33
      %p533 = scmp.lt.s32.totalorder %s33, 3
      %p534 = pnand %p532, %p533
      %p535 = pneg %p534
      // Predicated region
      $region69: #{mha_forward.1} parent=5 // pred_check
        _
      $region70: #{mha_forward.1} parent=5 // pred_check_branch
        %537 = sbr.rel (%p534) target = $region72
      $region71: #{mha_forward.1} parent=5 // pred_region
        %s538 = ssub.s32 %s33, 1
        %s539 = sand.u32 %s46, 1
        %s540 = scalar_lea.sflag [#allocation3], %s539
        %s541 = sand.u32 %s46, 1
        %s542 = smul.addr %s541, 8
        %s543 = scalar_lea.vmem [#allocation2], %s542
        // Predicated region
        $region73: #{mha_forward.1} parent=71 // pred_check
          %p544 = pneg %p59
        $region74: #{mha_forward.1} parent=71 // pred_check_branch
          %546 = sbr.rel (%p544) target = $region76
        $region75: #{mha_forward.1} parent=71 // pred_region
          %548 = dma.done %s540, 128
        $region76: #{mha_forward.1} parent=71 // pred_fallthru
          _
        %s549 = sand.u32 %s38, 1
        %s550 = scalar_lea.sflag [#allocation6], %s549
        %s551 = sand.u32 %s72, 1
        %s552 = smul.addr %s551, 8
        %s553 = scalar_lea.vmem [#allocation5], %s552
        // Predicated region
        $region77: #{mha_forward.1} parent=71 // pred_check
          %p554 = pneg %p85
        $region78: #{mha_forward.1} parent=71 // pred_check_branch
          %556 = sbr.rel (%p554) target = $region80
        $region79: #{mha_forward.1} parent=71 // pred_region
          %558 = dma.done %s550, 128
        $region80: #{mha_forward.1} parent=71 // pred_fallthru
          _
        %s559 = sand.u32 %s38, 1
        %s560 = scalar_lea.sflag [#allocation6], %s559
        %s561 = sand.u32 %s98, 1
        %s562 = smul.addr %s561, 8
        %s563 = scalar_lea.vmem [#allocation7], %s562
        // Predicated region
        $region81: #{mha_forward.1} parent=71 // pred_check
          %p564 = pneg %p111
        $region82: #{mha_forward.1} parent=71 // pred_check_branch
          %566 = sbr.rel (%p564) target = $region84
        $region83: #{mha_forward.1} parent=71 // pred_region
          %568 = dma.done %s560, 128
        $region84: #{mha_forward.1} parent=71 // pred_fallthru
          _
        // Predicated region
        $region85: #{mha_forward.1} parent=71 // pred_check
          %p569 = pneg %p195
        $region86: #{mha_forward.1} parent=71 // pred_check_branch
          %571 = sbr.rel (%p569) target = $region88
        $region87: #{mha_forward.1} parent=71 // pred_region
          %573 = dma.done [#allocation9], 16
        $region88: #{mha_forward.1} parent=71 // pred_fallthru
          _
        // Predicated region
        $region89: #{mha_forward.1} parent=71 // pred_check
          %p574 = pneg %p237
        $region90: #{mha_forward.1} parent=71 // pred_check_branch
          %576 = sbr.rel (%p574) target = $region92
        $region91: #{mha_forward.1} parent=71 // pred_region
          %578 = dma.done [#allocation9], 16
        $region92: #{mha_forward.1} parent=71 // pred_fallthru
          _
        // Predicated region
        $region93: #{mha_forward.1} parent=71 // pred_check
          %p579 = pneg %p279
        $region94: #{mha_forward.1} parent=71 // pred_check_branch
          %581 = sbr.rel (%p579) target = $region96
        $region95: #{mha_forward.1} parent=71 // pred_region
          %583 = dma.done [#allocation12], 16
        $region96: #{mha_forward.1} parent=71 // pred_fallthru
          _
        %s584 = sand.u32 %s46, 1
        %s585 = scalar_lea.sflag [#allocation3], %s584
        %s586 = sand.u32 %s46, 1
        %s587 = smul.addr %s586, 8
        %s588 = scalar_lea.vmem [#allocation2], %s587
        %p589 = pneg %p59
        %p590 = pneg %p56
        %s591 = sand.u32 %s38, 1
        %s592 = scalar_lea.sflag [#allocation6], %s591
        %s593 = sand.u32 %s72, 1
        %s594 = smul.addr %s593, 8
        %s595 = scalar_lea.vmem [#allocation5], %s594
        %p596 = pneg %p85
        %p597 = pneg %p82
        %s598 = sand.u32 %s38, 1
        %s599 = scalar_lea.sflag [#allocation6], %s598
        %s600 = sand.u32 %s98, 1
        %s601 = smul.addr %s600, 8
        %s602 = scalar_lea.vmem [#allocation7], %s601
        %p603 = pneg %p111
        %p604 = pneg %p108
        %p605 = pneg %p132
        %p606 = pneg %p129
        %p607 = pneg %p153
        %p608 = pneg %p150
        %p609 = pneg %p174
        %p610 = pneg %p171
        %p611 = pneg %p195
        %p612 = pneg %p192
        %p613 = pneg %p216
        %p614 = pneg %p213
        %p615 = pneg %p237
        %p616 = pneg %p234
        %p617 = pneg %p258
        %p618 = pneg %p255
        %p619 = pneg %p279
        %p620 = pneg %p276
        %p621 = pneg %p300
        %p622 = pneg %p297
        %p623 = pneg %p321
        %p624 = pneg %p318
        %p625 = pneg %p347
        %p626 = pneg %p344
        %p627 = scmp.lt.s32.totalorder %s38, 1
        %s628 = scalar_select %p627, %s38, 1
        %s629 = smul.addr %s628, 8
        %s630 = scalar_lea.vmem %s13, %s629
        %p631 = pneg %p373
        %p632 = pneg %p370
        %p633 = scmp.lt.s32.totalorder %s38, 1
        %s634 = scalar_select %p633, %s38, 1
        %s635 = smul.addr %s634, 8
        %s636 = scalar_lea.vmem %s14, %s635
        %p637 = pneg %p399
        %p638 = pneg %p396
        %s639 = sand.u32 %s386, 1
        %s640 = scalar_lea.sflag [#allocation4], %s639
        %s641 = sand.u32 %s386, 1
        %s642 = smul.addr %s641, 32
        %s643 = scalar_lea.vmem [#allocation13], %s642
        %p644 = scmp.lt.s32.totalorder %s38, 1
        %s645 = scalar_select %p644, %s38, 1
        %s646 = smul.addr %s645, 8
        %s647 = scalar_lea.vmem %s13, %s646
        %p648 = scmp.lt.s32.totalorder %s38, 1
        %s649 = scalar_select %p648, %s38, 1
        %s650 = smul.addr %s649, 8
        %s651 = scalar_lea.vmem %s14, %s650
        %v652 = vld [vmem:[%s543] sm:$0xff]
        %v653 = vld [vmem:[%s553] sm:$0xff]
        %v654 = vld [vmem:[%s563] sm:$0xff]
        %v655 = vld [vmem:[%s3] sm:$0xff]
        %v656 = vld [vmem:[%s3 + $0x8] sm:$0xff]
        %v657 = vld [vmem:[%s3 + $0x10] sm:$0xff]
        %v658 = vld [vmem:[%s3 + $0x18] sm:$0xff]
        %v659 = vld [vmem:[%s4] sm:$0x1]
        %v661 = vperm.slane %v659, 0
        %vm663 = vcmask 261120
        %v665 = vsel %vm663, %v652, 0
        %667 = vmatpush.msra.mxu0 0.0
        %668 = vmatpush.msra.mxu0 0.0
        %669 = vmatpush.msra.mxu0 0.0
        %670 = vmatpush.msra.mxu0 0.0
        %671 = vmatpush.msra.mxu0 0.0
        %672 = vmatpush.msra.mxu0 0.0
        %673 = vmatpush.msra.mxu0 0.0
        %674 = vmatpush.msra.mxu0 0.0
        %675 = vmatpush.msra.mxu0 0.0
        %676 = vmatpush.msra.mxu0 0.0
        %677 = vmatpush.msra.mxu0 0.0
        %678 = vmatpush.msra.mxu0 0.0
        %679 = vmatpush.msra.mxu0 %v658
        %680 = vmatpush.msra.mxu0 %v657
        %681 = vmatpush.msra.mxu0 %v656
        %682 = vmatpush.msra.mxu0 %v655
        %683 = vmatmul.f32.gmra.mxu0 %v665
        %v684 = vpop.f32.mrf.mxu0
        %v685 = vadd.f32 %v661, %v684
        %686 = vdwg.mxu0
        %v687 = vld [vmem:[%s5] sm:$0xff]
        %v688 = vld [vmem:[%s5 + $0x8] sm:$0xff]
        %v689 = vld [vmem:[%s5 + $0x10] sm:$0xff]
        %v690 = vld [vmem:[%s5 + $0x18] sm:$0xff]
        %v691 = vld [vmem:[#allocation8] sm:$0x1]
        %v693 = vperm.slane %v691, 0
        %v696 = vsel %vm663, %v653, 0
        %698 = vmatpush.msra.mxu0 0.0
        %699 = vmatpush.msra.mxu0 0.0
        %700 = vmatpush.msra.mxu0 0.0
        %701 = vmatpush.msra.mxu0 0.0
        %702 = vmatpush.msra.mxu0 0.0
        %703 = vmatpush.msra.mxu0 0.0
        %704 = vmatpush.msra.mxu0 0.0
        %705 = vmatpush.msra.mxu0 0.0
        %706 = vmatpush.msra.mxu0 0.0
        %707 = vmatpush.msra.mxu0 0.0
        %708 = vmatpush.msra.mxu0 0.0
        %709 = vmatpush.msra.mxu0 0.0
        %710 = vmatpush.msra.mxu0 %v690
        %711 = vmatpush.msra.mxu0 %v689
        %712 = vmatpush.msra.mxu0 %v688
        %713 = vmatpush.msra.mxu0 %v687
        %714 = vmatmul.f32.gmra.mxu0 %v696
        %v715 = vpop.f32.mrf.mxu0
        %v716 = vadd.f32 %v693, %v715
        %717 = vdwg.mxu0
        %v718 = vld [vmem:[%s7] sm:$0xff]
        %v719 = vld [vmem:[%s7 + $0x8] sm:$0xff]
        %v720 = vld [vmem:[%s7 + $0x10] sm:$0xff]
        %v721 = vld [vmem:[%s7 + $0x18] sm:$0xff]
        %v722 = vld [vmem:[#allocation10] sm:$0x1]
        %v724 = vperm.slane %v722, 0
        %v727 = vsel %vm663, %v654, 0
        %729 = vmatpush.msra.mxu0 0.0
        %730 = vmatpush.msra.mxu0 0.0
        %731 = vmatpush.msra.mxu0 0.0
        %732 = vmatpush.msra.mxu0 0.0
        %733 = vmatpush.msra.mxu0 0.0
        %734 = vmatpush.msra.mxu0 0.0
        %735 = vmatpush.msra.mxu0 0.0
        %736 = vmatpush.msra.mxu0 0.0
        %737 = vmatpush.msra.mxu0 0.0
        %738 = vmatpush.msra.mxu0 0.0
        %739 = vmatpush.msra.mxu0 0.0
        %740 = vmatpush.msra.mxu0 0.0
        %741 = vmatpush.msra.mxu0 %v721
        %742 = vmatpush.msra.mxu0 %v720
        %743 = vmatpush.msra.mxu0 %v719
        %744 = vmatpush.msra.mxu0 %v718
        %745 = vmatmul.f32.gmra.mxu0 %v727
        %v746 = vpop.f32.mrf.mxu0
        %v747 = vadd.f32 %v724, %v746
        %748 = vdwg.mxu0
        %v749 = vld [vmem:[%s9] sm:$0xff]
        %v750 = vld [vmem:[%s9 + $0x8] sm:$0xff]
        %v751 = vld [vmem:[%s9 + $0x10] sm:$0xff]
        %v752 = vld [vmem:[%s9 + $0x18] sm:$0xff]
        %v753 = vld [vmem:[%s9 + $0x20] sm:$0xff]
        %v754 = vld [vmem:[%s9 + $0x28] sm:$0xff]
        %v755 = vld [vmem:[%s9 + $0x30] sm:$0xff]
        %v756 = vld [vmem:[%s9 + $0x38] sm:$0xff]
        %vm757 = vcmask 130048
        %v759 = vsel %vm757, %v685, 0
        %v762 = vsel %vm757, %v716, 0
        %764 = vmatpush.xpose.msra.mxu0 0.0
        %765 = vmatpush.xpose.msra.mxu0 0.0
        %766 = vmatpush.xpose.msra.mxu0 0.0
        %767 = vmatpush.xpose.msra.mxu0 0.0
        %768 = vmatpush.xpose.msra.mxu0 0.0
        %769 = vmatpush.xpose.msra.mxu0 0.0
        %770 = vmatpush.xpose.msra.mxu0 0.0
        %771 = vmatpush.xpose.msra.mxu0 0.0
        %772 = vmatpush.xpose.msra.mxu0 0.0
        %773 = vmatpush.xpose.msra.mxu0 0.0
        %774 = vmatpush.xpose.msra.mxu0 0.0
        %775 = vmatpush.xpose.msra.mxu0 0.0
        %776 = vmatpush.xpose.msra.mxu0 0.0
        %777 = vmatpush.xpose.msra.mxu0 0.0
        %778 = vmatpush.xpose.msra.mxu0 0.0
        %779 = vmatpush.xpose.msra.mxu0 %v762
        %780 = vmatmul.f32.gmra.mxu0 %v759
        %v781 = vpop.f32.mrf.mxu0
        %v782 = vadd.f32 0.0, %v781
        %783 = vdwg.mxu0
        %v784 = vmul.f32 %v782, 0.25
        %vm785 = vcmask 64512
        %v786 = vsel %vm785, %v784, -inf
        %787 = vmax.xlane.f32.xlu0 %v786
        %v788 = vpop.xlane.xlu0 %787
        %v789 = vsub.f32 %v784, %v788
        %v790 = vmul.f32 %v789, 1.442695
        %v791 = vpow.pop %v790
        %v792 = vsel %vm785, %v791, 0.0
        %793 = vadd.xlane.f32.xlu0 %v792
        %v794 = vpop.xlane.xlu0 %793
        %v795 = vrcp.pop %v794
        %v796 = vmul.f32 %v791, %v795
        %v798 = vsel %vm785, %v796, 0
        %800 = vmatpush.msra.mxu0 0.0
        %801 = vmatpush.msra.mxu0 0.0
        %802 = vmatpush.msra.mxu0 0.0
        %803 = vmatpush.msra.mxu0 0.0
        %804 = vmatpush.msra.mxu0 0.0
        %805 = vmatpush.msra.mxu0 0.0
        %806 = vmatpush.msra.mxu0 0.0
        %807 = vmatpush.msra.mxu0 0.0
        %808 = vmatpush.msra.mxu0 0.0
        %809 = vmatpush.msra.mxu0 0.0
        %810 = vmatpush.msra.mxu0 0.0
        %811 = vmatpush.msra.mxu0 0.0
        %812 = vmatpush.msra.mxu0 0.0
        %813 = vmatpush.msra.mxu0 0.0
        %814 = vmatpush.msra.mxu0 0.0
        %815 = vmatpush.msra.mxu0 %v747
        %816 = vmatmul.f32.gmra.mxu0 %v798
        %v817 = vpop.f32.mrf.mxu0
        %v818 = vadd.f32 0.0, %v817
        %819 = vdwg.mxu0
        %vm820 = vcmp.ne.f32.partialorder %v818, %v818
        %v821 = vsel %vm820, 0.0, %v818
        %vm822 = vcmp.ne.f32.partialorder %v796, %v796
        %v823 = vsel %vm822, 0.0, %v796
        %824 = vst.msk [vmem:[%s643] sm:$0xff] %vm785, %v823
        %825 = vrot.lane.b32.xlu0 %v685, 112
        %v826 = vpop.permute.xlu0 %825
        %827 = vrot.lane.b32.xlu0 %v716, 112
        %v828 = vpop.permute.xlu0 %827
        %v829 = vsel %vm757, %v826, 0
        %v831 = vsel %vm757, %v828, 0
        %833 = vmatpush.xpose.msra.mxu0 0.0
        %834 = vmatpush.xpose.msra.mxu0 0.0
        %835 = vmatpush.xpose.msra.mxu0 0.0
        %836 = vmatpush.xpose.msra.mxu0 0.0
        %837 = vmatpush.xpose.msra.mxu0 0.0
        %838 = vmatpush.xpose.msra.mxu0 0.0
        %839 = vmatpush.xpose.msra.mxu0 0.0
        %840 = vmatpush.xpose.msra.mxu0 0.0
        %841 = vmatpush.xpose.msra.mxu0 0.0
        %842 = vmatpush.xpose.msra.mxu0 0.0
        %843 = vmatpush.xpose.msra.mxu0 0.0
        %844 = vmatpush.xpose.msra.mxu0 0.0
        %845 = vmatpush.xpose.msra.mxu0 0.0
        %846 = vmatpush.xpose.msra.mxu0 0.0
        %847 = vmatpush.xpose.msra.mxu0 0.0
        %848 = vmatpush.xpose.msra.mxu0 %v831
        %849 = vmatmul.f32.gmra.mxu0 %v829
        %v850 = vpop.f32.mrf.mxu0
        %v851 = vadd.f32 0.0, %v850
        %852 = vdwg.mxu0
        %v853 = vmul.f32 %v851, 0.25
        %v854 = vsel %vm785, %v853, -inf
        %855 = vmax.xlane.f32.xlu0 %v854
        %v856 = vpop.xlane.xlu0 %855
        %v857 = vsub.f32 %v853, %v856
        %v858 = vmul.f32 %v857, 1.442695
        %v859 = vpow.pop %v858
        %v860 = vsel %vm785, %v859, 0.0
        %861 = vadd.xlane.f32.xlu0 %v860
        %v862 = vpop.xlane.xlu0 %861
        %v863 = vrcp.pop %v862
        %v864 = vmul.f32 %v859, %v863
        %866 = vrot.lane.b32.xlu0 %v747, 112
        %v867 = vpop.permute.xlu0 %866
        %v870 = vsel %vm785, %v864, 0
        %872 = vmatpush.msra.mxu0 0.0
        %873 = vmatpush.msra.mxu0 0.0
        %874 = vmatpush.msra.mxu0 0.0
        %875 = vmatpush.msra.mxu0 0.0
        %876 = vmatpush.msra.mxu0 0.0
        %877 = vmatpush.msra.mxu0 0.0
        %878 = vmatpush.msra.mxu0 0.0
        %879 = vmatpush.msra.mxu0 0.0
        %880 = vmatpush.msra.mxu0 0.0
        %881 = vmatpush.msra.mxu0 0.0
        %882 = vmatpush.msra.mxu0 0.0
        %883 = vmatpush.msra.mxu0 0.0
        %884 = vmatpush.msra.mxu0 0.0
        %885 = vmatpush.msra.mxu0 0.0
        %886 = vmatpush.msra.mxu0 0.0
        %887 = vmatpush.msra.mxu0 %v867
        %888 = vmatmul.f32.gmra.mxu0 %v870
        %v889 = vpop.f32.mrf.mxu0
        %v890 = vadd.f32 0.0, %v889
        %891 = vdwg.mxu0
        %vm892 = vcmp.ne.f32.partialorder %v890, %v890
        %v893 = vsel %vm892, 0.0, %v890
        %vm894 = vcmp.ne.f32.partialorder %v864, %v864
        %v895 = vsel %vm894, 0.0, %v864
        %s896 = scalar_lea.vmem %s643, 8 [#allocation13]
        %897 = vst.msk [vmem:[%s896] sm:$0xff] %vm785, %v895
        %v899 = vsel %vm757, %v893, 0
        %901 = vmatpush.msra.mxu0 0.0
        %902 = vmatpush.msra.mxu0 0.0
        %903 = vmatpush.msra.mxu0 0.0
        %904 = vmatpush.msra.mxu0 0.0
        %905 = vmatpush.msra.mxu0 0.0
        %906 = vmatpush.msra.mxu0 0.0
        %907 = vmatpush.msra.mxu0 0.0
        %908 = vmatpush.msra.mxu0 0.0
        %909 = vmatpush.msra.mxu0 0.0
        %910 = vmatpush.msra.mxu0 0.0
        %911 = vmatpush.msra.mxu0 0.0
        %912 = vmatpush.msra.mxu0 0.0
        %913 = vmatpush.msra.mxu0 0.0
        %914 = vmatpush.msra.mxu0 0.0
        %915 = vmatpush.msra.mxu0 %v752
        %916 = vmatpush.msra.mxu0 %v751
        %917 = vmatmul.f32.gmra.mxu0 %v899
        %v918 = vpop.f32.mrf.mxu0
        %v919 = vadd.f32 0.0, %v918
        %920 = vdwg.mxu0
        %v922 = vsel %vm757, %v821, 0
        %924 = vmatpush.msra.mxu0 0.0
        %925 = vmatpush.msra.mxu0 0.0
        %926 = vmatpush.msra.mxu0 0.0
        %927 = vmatpush.msra.mxu0 0.0
        %928 = vmatpush.msra.mxu0 0.0
        %929 = vmatpush.msra.mxu0 0.0
        %930 = vmatpush.msra.mxu0 0.0
        %931 = vmatpush.msra.mxu0 0.0
        %932 = vmatpush.msra.mxu0 0.0
        %933 = vmatpush.msra.mxu0 0.0
        %934 = vmatpush.msra.mxu0 0.0
        %935 = vmatpush.msra.mxu0 0.0
        %936 = vmatpush.msra.mxu0 0.0
        %937 = vmatpush.msra.mxu0 0.0
        %938 = vmatpush.msra.mxu0 %v750
        %939 = vmatpush.msra.mxu0 %v749
        %940 = vmatmul.f32.gmra.mxu0 %v922
        %v941 = vpop.f32.mrf.mxu0
        %v942 = vadd.f32 %v919, %v941
        %943 = vdwg.mxu0
        %944 = vrot.lane.b32.xlu0 %v685, 96
        %v945 = vpop.permute.xlu0 %944
        %946 = vrot.lane.b32.xlu0 %v716, 96
        %v947 = vpop.permute.xlu0 %946
        %v948 = vsel %vm757, %v945, 0
        %v950 = vsel %vm757, %v947, 0
        %952 = vmatpush.xpose.msra.mxu0 0.0
        %953 = vmatpush.xpose.msra.mxu0 0.0
        %954 = vmatpush.xpose.msra.mxu0 0.0
        %955 = vmatpush.xpose.msra.mxu0 0.0
        %956 = vmatpush.xpose.msra.mxu0 0.0
        %957 = vmatpush.xpose.msra.mxu0 0.0
        %958 = vmatpush.xpose.msra.mxu0 0.0
        %959 = vmatpush.xpose.msra.mxu0 0.0
        %960 = vmatpush.xpose.msra.mxu0 0.0
        %961 = vmatpush.xpose.msra.mxu0 0.0
        %962 = vmatpush.xpose.msra.mxu0 0.0
        %963 = vmatpush.xpose.msra.mxu0 0.0
        %964 = vmatpush.xpose.msra.mxu0 0.0
        %965 = vmatpush.xpose.msra.mxu0 0.0
        %966 = vmatpush.xpose.msra.mxu0 0.0
        %967 = vmatpush.xpose.msra.mxu0 %v950
        %968 = vmatmul.f32.gmra.mxu0 %v948
        %v969 = vpop.f32.mrf.mxu0
        %v970 = vadd.f32 0.0, %v969
        %971 = vdwg.mxu0
        %v972 = vmul.f32 %v970, 0.25
        %v973 = vsel %vm785, %v972, -inf
        %974 = vmax.xlane.f32.xlu0 %v973
        %v975 = vpop.xlane.xlu0 %974
        %v976 = vsub.f32 %v972, %v975
        %v977 = vmul.f32 %v976, 1.442695
        %v978 = vpow.pop %v977
        %v979 = vsel %vm785, %v978, 0.0
        %980 = vadd.xlane.f32.xlu0 %v979
        %v981 = vpop.xlane.xlu0 %980
        %v982 = vrcp.pop %v981
        %v983 = vmul.f32 %v978, %v982
        %984 = vrot.lane.b32.xlu0 %v747, 96
        %v985 = vpop.permute.xlu0 %984
        %v988 = vsel %vm785, %v983, 0
        %990 = vmatpush.msra.mxu0 0.0
        %991 = vmatpush.msra.mxu0 0.0
        %992 = vmatpush.msra.mxu0 0.0
        %993 = vmatpush.msra.mxu0 0.0
        %994 = vmatpush.msra.mxu0 0.0
        %995 = vmatpush.msra.mxu0 0.0
        %996 = vmatpush.msra.mxu0 0.0
        %997 = vmatpush.msra.mxu0 0.0
        %998 = vmatpush.msra.mxu0 0.0
        %999 = vmatpush.msra.mxu0 0.0
        %1000 = vmatpush.msra.mxu0 0.0
        %1001 = vmatpush.msra.mxu0 0.0
        %1002 = vmatpush.msra.mxu0 0.0
        %1003 = vmatpush.msra.mxu0 0.0
        %1004 = vmatpush.msra.mxu0 0.0
        %1005 = vmatpush.msra.mxu0 %v985
        %1006 = vmatmul.f32.gmra.mxu0 %v988
        %v1007 = vpop.f32.mrf.mxu0
        %v1008 = vadd.f32 0.0, %v1007
        %1009 = vdwg.mxu0
        %vm1010 = vcmp.ne.f32.partialorder %v1008, %v1008
        %v1011 = vsel %vm1010, 0.0, %v1008
        %vm1012 = vcmp.ne.f32.partialorder %v983, %v983
        %v1013 = vsel %vm1012, 0.0, %v983
        %s1014 = scalar_lea.vmem %s643, 16 [#allocation13]
        %1015 = vst.msk [vmem:[%s1014] sm:$0xff] %vm785, %v1013
        %v1017 = vsel %vm757, %v1011, 0
        %1019 = vmatpush.msra.mxu0 0.0
        %1020 = vmatpush.msra.mxu0 0.0
        %1021 = vmatpush.msra.mxu0 0.0
        %1022 = vmatpush.msra.mxu0 0.0
        %1023 = vmatpush.msra.mxu0 0.0
        %1024 = vmatpush.msra.mxu0 0.0
        %1025 = vmatpush.msra.mxu0 0.0
        %1026 = vmatpush.msra.mxu0 0.0
        %1027 = vmatpush.msra.mxu0 0.0
        %1028 = vmatpush.msra.mxu0 0.0
        %1029 = vmatpush.msra.mxu0 0.0
        %1030 = vmatpush.msra.mxu0 0.0
        %1031 = vmatpush.msra.mxu0 0.0
        %1032 = vmatpush.msra.mxu0 0.0
        %1033 = vmatpush.msra.mxu0 %v754
        %1034 = vmatpush.msra.mxu0 %v753
        %1035 = vmatmul.f32.gmra.mxu0 %v1017
        %v1036 = vpop.f32.mrf.mxu0
        %v1037 = vadd.f32 0.0, %v1036
        %1038 = vdwg.mxu0
        %v1039 = vadd.f32 %v942, %v1037
        %1040 = vrot.lane.b32.xlu0 %v685, 80
        %v1041 = vpop.permute.xlu0 %1040
        %1042 = vrot.lane.b32.xlu0 %v716, 80
        %v1043 = vpop.permute.xlu0 %1042
        %v1044 = vsel %vm757, %v1041, 0
        %v1046 = vsel %vm757, %v1043, 0
        %1048 = vmatpush.xpose.msra.mxu0 0.0
        %1049 = vmatpush.xpose.msra.mxu0 0.0
        %1050 = vmatpush.xpose.msra.mxu0 0.0
        %1051 = vmatpush.xpose.msra.mxu0 0.0
        %1052 = vmatpush.xpose.msra.mxu0 0.0
        %1053 = vmatpush.xpose.msra.mxu0 0.0
        %1054 = vmatpush.xpose.msra.mxu0 0.0
        %1055 = vmatpush.xpose.msra.mxu0 0.0
        %1056 = vmatpush.xpose.msra.mxu0 0.0
        %1057 = vmatpush.xpose.msra.mxu0 0.0
        %1058 = vmatpush.xpose.msra.mxu0 0.0
        %1059 = vmatpush.xpose.msra.mxu0 0.0
        %1060 = vmatpush.xpose.msra.mxu0 0.0
        %1061 = vmatpush.xpose.msra.mxu0 0.0
        %1062 = vmatpush.xpose.msra.mxu0 0.0
        %1063 = vmatpush.xpose.msra.mxu0 %v1046
        %1064 = vmatmul.f32.gmra.mxu0 %v1044
        %v1065 = vpop.f32.mrf.mxu0
        %v1066 = vadd.f32 0.0, %v1065
        %1067 = vdwg.mxu0
        %v1068 = vmul.f32 %v1066, 0.25
        %v1069 = vsel %vm785, %v1068, -inf
        %1070 = vmax.xlane.f32.xlu0 %v1069
        %v1071 = vpop.xlane.xlu0 %1070
        %v1072 = vsub.f32 %v1068, %v1071
        %v1073 = vmul.f32 %v1072, 1.442695
        %v1074 = vpow.pop %v1073
        %v1075 = vsel %vm785, %v1074, 0.0
        %1076 = vadd.xlane.f32.xlu0 %v1075
        %v1077 = vpop.xlane.xlu0 %1076
        %v1078 = vrcp.pop %v1077
        %v1079 = vmul.f32 %v1074, %v1078
        %1080 = vrot.lane.b32.xlu0 %v747, 80
        %v1081 = vpop.permute.xlu0 %1080
        %v1084 = vsel %vm785, %v1079, 0
        %1086 = vmatpush.msra.mxu0 0.0
        %1087 = vmatpush.msra.mxu0 0.0
        %1088 = vmatpush.msra.mxu0 0.0
        %1089 = vmatpush.msra.mxu0 0.0
        %1090 = vmatpush.msra.mxu0 0.0
        %1091 = vmatpush.msra.mxu0 0.0
        %1092 = vmatpush.msra.mxu0 0.0
        %1093 = vmatpush.msra.mxu0 0.0
        %1094 = vmatpush.msra.mxu0 0.0
        %1095 = vmatpush.msra.mxu0 0.0
        %1096 = vmatpush.msra.mxu0 0.0
        %1097 = vmatpush.msra.mxu0 0.0
        %1098 = vmatpush.msra.mxu0 0.0
        %1099 = vmatpush.msra.mxu0 0.0
        %1100 = vmatpush.msra.mxu0 0.0
        %1101 = vmatpush.msra.mxu0 %v1081
        %1102 = vmatmul.f32.gmra.mxu0 %v1084
        %v1103 = vpop.f32.mrf.mxu0
        %v1104 = vadd.f32 0.0, %v1103
        %1105 = vdwg.mxu0
        %vm1106 = vcmp.ne.f32.partialorder %v1104, %v1104
        %v1107 = vsel %vm1106, 0.0, %v1104
        %vm1108 = vcmp.ne.f32.partialorder %v1079, %v1079
        %v1109 = vsel %vm1108, 0.0, %v1079
        %s1110 = scalar_lea.vmem %s643, 24 [#allocation13]
        %1111 = vst.msk [vmem:[%s1110] sm:$0xff] %vm785, %v1109
        %v1113 = vsel %vm757, %v1107, 0
        %1115 = vmatpush.msra.mxu0 0.0
        %1116 = vmatpush.msra.mxu0 0.0
        %1117 = vmatpush.msra.mxu0 0.0
        %1118 = vmatpush.msra.mxu0 0.0
        %1119 = vmatpush.msra.mxu0 0.0
        %1120 = vmatpush.msra.mxu0 0.0
        %1121 = vmatpush.msra.mxu0 0.0
        %1122 = vmatpush.msra.mxu0 0.0
        %1123 = vmatpush.msra.mxu0 0.0
        %1124 = vmatpush.msra.mxu0 0.0
        %1125 = vmatpush.msra.mxu0 0.0
        %1126 = vmatpush.msra.mxu0 0.0
        %1127 = vmatpush.msra.mxu0 0.0
        %1128 = vmatpush.msra.mxu0 0.0
        %1129 = vmatpush.msra.mxu0 %v756
        %1130 = vmatpush.msra.mxu0 %v755
        %1131 = vmatmul.f32.gmra.mxu0 %v1113
        %v1132 = vpop.f32.mrf.mxu0
        %v1133 = vadd.f32 0.0, %v1132
        %1134 = vdwg.mxu0
        %v1135 = vadd.f32 %v1039, %v1133
        %v1136 = vld [vmem:[#allocation11] sm:$0x1]
        %v1138 = vperm.slane %v1136, 0
        %v1140 = vadd.f32 %v1135, %v1138
        %v1141 = vadd.f32 %v652, %v1140
        %1142 = vst.msk [vmem:[%s651] sm:$0xff] %vm663, %v1141
        %v1143 = vsel %vm663, %v1141, 0.0
        %1144 = vadd.xlane.f32.xlu0 %v1143
        %v1145 = vpop.xlane.xlu0 %1144
        %v1146 = vrcp.pop 32.0
        %v1147 = vmul.f32 32.0, %v1146
        %v1148 = vsub.f32 1.0, %v1147
        %v1149 = vmul.f32 %v1146, %v1148
        %v1150 = vadd.f32 %v1146, %v1149
        %vm1151 = vweird.f32 %v1146
        %v1152 = vsel %vm1151, %v1146, %v1150
        %v1153 = vmul.f32 %v1145, %v1152
        %v1154 = vsub.f32 %v1141, %v1153
        %v1155 = vmul.f32 %v1154, %v1154
        %v1156 = vsel %vm663, %v1155, 0.0
        %1157 = vadd.xlane.f32.xlu0 %v1156
        %v1158 = vpop.xlane.xlu0 %1157
        %v1159 = vmul.f32 %v1158, %v1152
        %v1160 = vadd.f32 %v1159, 1e-05
        %v1161 = vrsqrt.pop %v1160
        %v1162 = vmul.f32 %v1161, %v1160
        %v1163 = vmul.f32 %v1162, %v1161
        %v1164 = vmul.f32 0.5, %v1163
        %v1165 = vsub.f32 1.5, %v1164
        %v1166 = vmul.f32 %v1161, %v1165
        %vm1167 = vweird.f32 %v1160
        %vm1168 = vweird.f32 %v1161
        %vm1169 = vmor %vm1167, %vm1168
        %v1170 = vsel %vm1169, %v1161, %v1166
        %v1171 = vmul.f32 %v1154, %v1170
        %v1172 = vld [vmem:[%s11] sm:$0x1]
        %v1174 = vperm.slane %v1172, 0
        %v1176 = vmul.f32 %v1171, %v1174
        %v1177 = vld [vmem:[%s12] sm:$0x1]
        %v1179 = vperm.slane %v1177, 0
        %v1181 = vadd.f32 %v1176, %v1179
        %1182 = vst.msk [vmem:[%s647] sm:$0xff] %vm663, %v1181
        %p1183 = scmp.lt.s32.totalorder %s38, 1
        %s1184 = scalar_select %p1183, %s38, 1
        %s1185 = smul.addr %s1184, 8
        %s1186 = scalar_lea.vmem %s13, %s1185
        %p1187 = scmp.lt.s32.totalorder %s38, 1
        %s1188 = scalar_select %p1187, %s38, 1
        %s1189 = smul.addr %s1188, 8
        %s1190 = scalar_lea.vmem %s14, %s1189
        %s1191 = sand.u32 %s386, 1
        %s1192 = scalar_lea.sflag [#allocation4], %s1191
        %s1193 = sand.u32 %s386, 1
        %s1194 = smul.addr %s1193, 32
        %s1195 = scalar_lea.vmem [#allocation13], %s1194
        // Predicated region
        $region97: #{mha_forward.1} parent=71 // pred_check
          %p1196 = pneg %p344
        $region98: #{mha_forward.1} parent=71 // pred_check_branch
          %1198 = sbr.rel (%p1196) target = $region100
        $region99: #{mha_forward.1} parent=71 // pred_region
          _
        $region100: #{mha_forward.1} parent=71 // pred_fallthru
          _
        // Predicated region
        $region101: #{mha_forward.1} parent=71 // pred_check
          %p1199 = pneg %p370
        $region102: #{mha_forward.1} parent=71 // pred_check_branch
          %1201 = sbr.rel (%p1199) target = $region104
        $region103: #{mha_forward.1} parent=71 // pred_region
          _
        $region104: #{mha_forward.1} parent=71 // pred_fallthru
          _
        // Predicated region
        $region105: #{mha_forward.1} parent=71 // pred_check
          %p1202 = pneg %p396
        $region106: #{mha_forward.1} parent=71 // pred_check_branch
          %1204 = sbr.rel (%p1202) target = $region108
        $region107: #{mha_forward.1} parent=71 // pred_region
          %1206 = vsyncadd %s1192, 0
          %s1207 = smul.addr %s38, 4
          %s1208 = smul.addr %s1207, 8
          %s1209 = scalar_lea.hbm %s15, %s1208
          %s1210 = sshll.u32 %s1195, 4
          %s1211 = int_to_ptr.vmem [resolvable:$true] %s1210
          %s1212 = sshll.u32 %s1209, 4
          %s1213 = int_to_ptr.hbm [resolvable:$true] %s1212
          %1218 = dma.vmem_to_hbm [thread:$0]  %s1211, 512, %s1213, %s1192, 128, 128, 8
        $region108: #{mha_forward.1} parent=71 // pred_fallthru
          _
      $region72: #{mha_forward.1} parent=5 // pred_fallthru
        _
      %p1219 = scmp.le.s32.totalorder 2, %s33
      // Predicated region
      $region109: #{mha_forward.1} parent=5 // pred_check
        %p1220 = pneg %p1219
      $region110: #{mha_forward.1} parent=5 // pred_check_branch
        %1222 = sbr.rel (%p1220) target = $region112
      $region111: #{mha_forward.1} parent=5 // pred_region
        %s1223 = ssub.s32 %s33, 2
        // Predicated region
        $region113: #{mha_forward.1} parent=111 // pred_check
          %p1224 = pneg %p350
        $region114: #{mha_forward.1} parent=111 // pred_check_branch
          %1226 = sbr.rel (%p1224) target = $region116
        $region115: #{mha_forward.1} parent=111 // pred_region
          %p1227 = scmp.lt.s32.totalorder %s39, 1
          %s1228 = scalar_select %p1227, %s39, 1
          %s1229 = smul.addr %s1228, 8
          %s1230 = scalar_lea.vmem %s13, %s1229
        $region116: #{mha_forward.1} parent=111 // pred_fallthru
          _
        // Predicated region
        $region117: #{mha_forward.1} parent=111 // pred_check
          %p1231 = pneg %p376
        $region118: #{mha_forward.1} parent=111 // pred_check_branch
          %1233 = sbr.rel (%p1231) target = $region120
        $region119: #{mha_forward.1} parent=111 // pred_region
          %p1234 = scmp.lt.s32.totalorder %s39, 1
          %s1235 = scalar_select %p1234, %s39, 1
          %s1236 = smul.addr %s1235, 8
          %s1237 = scalar_lea.vmem %s14, %s1236
        $region120: #{mha_forward.1} parent=111 // pred_fallthru
          _
        // Predicated region
        $region121: #{mha_forward.1} parent=111 // pred_check
          %p1238 = pneg %p402
        $region122: #{mha_forward.1} parent=111 // pred_check_branch
          %1240 = sbr.rel (%p1238) target = $region124
        $region123: #{mha_forward.1} parent=111 // pred_region
          %s1241 = sand.u32 %s387, 1
          %s1242 = scalar_lea.sflag [#allocation4], %s1241
          %s1243 = sand.u32 %s387, 1
          %s1244 = smul.addr %s1243, 32
          %s1245 = scalar_lea.vmem [#allocation13], %s1244
          %1247 = dma.done %s1242, 512
        $region124: #{mha_forward.1} parent=111 // pred_fallthru
          _
      $region112: #{mha_forward.1} parent=5 // pred_fallthru
        _
    $region6: #{mha_forward.1} parent=1 // loop_footer
      %s37 = sadd.s32 1, %s33
    $region7: #{mha_forward.1} parent=1 // loop_footer_branch
      %32 = sbr.rel target = $region3
    $region8: #{mha_forward.1} parent=1 // loop_exit
      _
    %1248 = vsyncpa [#allocation3], 1
    %s1249 = scalar_lea.sflag [#allocation3], 1
    %1250 = vsyncpa %s1249, 1
    %1251 = vsyncpa [#allocation6], 1
    %s1252 = scalar_lea.sflag [#allocation6], 1
    %1253 = vsyncpa %s1252, 1
    %1254 = vsyncpa [#allocation9], 1
    %1255 = vsyncpa [#allocation12], 1
    %1256 = vsyncpa [#allocation4], 1
    %s1257 = scalar_lea.sflag [#allocation4], 1
    %1258 = vsyncpa %s1257, 1

</llo_original>
